<compile_context>
chip_gen: v7x
topology: tpu7x:2x2x1
jax: 0.10.0
libtpu: 0.0.40
codegen_flags: <defaults>
</compile_context>

<pallas_src>
import functools

import jax
import jax.numpy as jnp
from jax.experimental import pallas as pl
from jax.experimental.pallas import tpu as pltpu


# ----------------------------- Fused Pallas kernel ---------------------------

def _fused_qst_kernel(q_ids_ref, embed_ref, w_ih0_ref, *refs,
                      num_layers, hidden_size):
    """gather -> tanh -> L LSTM layers (wavefront) -> cat(h,c) -> tanh -> Linear.

    refs = [w_rhs_0, b_0, ..., w_rhs_{L-1}, b_{L-1}, fc_w_t, fc_b, out]
      w_rhs_l = [W_hh_l^T | W_ih_{l+1}^T]  (H, 8H)   for l < L-1
              =  W_hh_l^T                  (H, 4H)   for l = L-1
    """
    *layer_refs, fc_w_ref, fc_b_ref, out_ref = refs
    H = hidden_size
    G = 4 * H
    B, T = q_ids_ref.shape
    mm_dtype = w_ih0_ref.dtype            # matmul operand dtype (bf16)

    # ---- Embedding gather (ids in SMEM, table in VMEM) + input tanh ---------
    # embed_ref is (vocab, 1, E): dynamic leading-dim row loads; row order t*B+b.
    rows = []
    for t in range(T):
        for b in range(B):
            rows.append(embed_ref[q_ids_ref[b, t]])            # (1, E)
    x = jnp.tanh(jnp.concatenate(rows, axis=0))                 # (T*B, E) fp32

    # ---- Layer-0 input projection hoisted: ONE matmul for all T steps -------
    bias0 = layer_refs[1][...]                                  # (1, 4H) fp32
    gx0 = (jnp.dot(x.astype(mm_dtype), w_ih0_ref[...],
                   preferred_element_type=jnp.float32) + bias0)  # (T*B, 4H)
    gx_layer = [gx0[t * B:(t + 1) * B, :] for t in range(T)]     # per-step (B, 4H)

    feat_parts = []
    for layer in range(num_layers):
        w_rhs = layer_refs[2 * layer][...]                      # (H, 4H) or (H, 8H)
        has_next = layer + 1 < num_layers
        bias_next = layer_refs[2 * (layer + 1) + 1][...] if has_next else None

        h = jnp.zeros((B, H), jnp.float32)
        c = jnp.zeros((B, H), jnp.float32)
        rec = jnp.zeros((B, G), jnp.float32)   # h_{t-1} @ W_hh, carried from prev step
        next_gx = []
        # Statically unrolled recurrence; h/c/rec live in vregs (no scratch/grid).
        for t in range(T):
            gates = gx_layer[t] + rec                           # (B, 4H) fp32
            # Whole-vreg transcendentals, then gate slices (PyTorch order i,f,g,o).
            s = jax.nn.sigmoid(gates)
            tg = jnp.tanh(gates)
            i_g = s[:, 0:H]
            f_g = s[:, H:2 * H]
            g_g = tg[:, 2 * H:3 * H]
            o_g = s[:, 3 * H:4 * H]
            c = f_g * c + i_g * g_g
            h = o_g * jnp.tanh(c)
            # One fused MXU matmul per step: [h @ W_hh_l | h @ W_ih_{l+1}].
            fused = jnp.dot(h.astype(mm_dtype), w_rhs,
                            preferred_element_type=jnp.float32)
            rec = fused[:, 0:G]
            if has_next:
                next_gx.append(fused[:, G:2 * G] + bias_next)   # next layer's gx_t
        feat_parts.append(h)   # final hidden state of this layer
        feat_parts.append(c)   # final cell state of this layer
        if has_next:
            gx_layer = next_gx

    # torch.cat((hidden, cell), 2).transpose(0,1).reshape(B, -1)
    #   == per batch row: [h_0, c_0, h_1, c_1, ...]
    feat = jnp.tanh(jnp.concatenate(feat_parts, axis=1))        # (B, 2*L*H)
    out_ref[...] = (jnp.dot(feat.astype(mm_dtype), fc_w_ref[...],
                            preferred_element_type=jnp.float32)
                    + fc_b_ref[...]).astype(out_ref.dtype)


def qst_lstm_encoder_forward(kparams, question, *, num_layers, hidden_size):
    """question (B, T) int32 -> (B, embed_size) f32; single grid-less pallas_call."""
    B, T = question.shape
    embed_size = kparams["fc_w_t"].shape[1]

    vmem_args = [kparams["embed"], kparams["w_ih0_t"]]
    for layer in range(num_layers):
        vmem_args += [kparams[f"w_rhs_{layer}"], kparams[f"b_{layer}"]]
    vmem_args += [kparams["fc_w_t"], kparams["fc_b"]]

    kernel = functools.partial(_fused_qst_kernel,
                               num_layers=num_layers,
                               hidden_size=hidden_size)
    # Grid-less single-block kernel: ids go straight to SMEM; all weights/table are
    # whole-array VMEM blocks (a few tens of KiB total, one DMA each).
    return pl.pallas_call(
        kernel,
        in_specs=[pl.BlockSpec(memory_space=pltpu.MemorySpace.SMEM)]
                 + [pl.BlockSpec(memory_space=pltpu.MemorySpace.VMEM)] * len(vmem_args),
        out_specs=pl.BlockSpec(memory_space=pltpu.MemorySpace.VMEM),
        out_shape=jax.ShapeDtypeStruct((B, embed_size), jnp.float32),
    )(question.astype(jnp.int32), *vmem_args)


# ------------------------- Parameters (PyTorch layout) ------------------------

def init_params(key, qst_vocab_size, word_embed_size, embed_size,
                num_layers, hidden_size):
    """fp32 parameters in PyTorch nn.Embedding / nn.LSTM / nn.Linear layout."""
    params = {}
    keys = iter(jax.random.split(key, 1 + 4 * num_layers + 2))

    params["embed"] = jax.random.normal(
        next(keys), (qst_vocab_size, word_embed_size), jnp.float32)

    scale = hidden_size ** -0.5
    for layer in range(num_layers):
        din = word_embed_size if layer == 0 else hidden_size
        params[f"w_ih_{layer}"] = jax.random.uniform(
            next(keys), (4 * hidden_size, din), jnp.float32, -scale, scale)
        params[f"w_hh_{layer}"] = jax.random.uniform(
            next(keys), (4 * hidden_size, hidden_size), jnp.float32, -scale, scale)
        params[f"b_ih_{layer}"] = jax.random.uniform(
            next(keys), (4 * hidden_size,), jnp.float32, -scale, scale)
        params[f"b_hh_{layer}"] = jax.random.uniform(
            next(keys), (4 * hidden_size,), jnp.float32, -scale, scale)

    fan_in = 2 * num_layers * hidden_size
    fc_scale = fan_in ** -0.5
    params["fc_w"] = jax.random.uniform(
        next(keys), (embed_size, fan_in), jnp.float32, -fc_scale, fc_scale)
    params["fc_b"] = jax.random.uniform(
        next(keys), (embed_size,), jnp.float32, -fc_scale, fc_scale)
    return params


def prepare_kernel_params(params, num_layers, matmul_dtype=jnp.bfloat16):
    """One-time weight prep: transpose, fuse [W_hh_l | W_ih_{l+1}], pre-cast matmul
    operands to bf16 (biases / embedding table stay fp32 for the elementwise path)."""
    kp = {"embed": params["embed"][:, None, :].astype(jnp.float32)}   # (V, 1, E)
    kp["w_ih0_t"] = params["w_ih_0"].T.astype(matmul_dtype)           # (E, 4H)
    for layer in range(num_layers):
        w_hh_t = params[f"w_hh_{layer}"].T                            # (H, 4H)
        if layer + 1 < num_layers:
            w_rhs = jnp.concatenate(
                [w_hh_t, params[f"w_ih_{layer + 1}"].T], axis=1)      # (H, 8H)
        else:
            w_rhs = w_hh_t                                            # (H, 4H)
        kp[f"w_rhs_{layer}"] = w_rhs.astype(matmul_dtype)
        kp[f"b_{layer}"] = (params[f"b_ih_{layer}"]
                            + params[f"b_hh_{layer}"])[None, :].astype(jnp.float32)
    kp["fc_w_t"] = params["fc_w"].T.astype(matmul_dtype)              # (2*L*H, E)
    kp["fc_b"] = params["fc_b"][None, :].astype(jnp.float32)          # (1, E)
    return kp


# ------------------------------ Reference (JAX) ------------------------------

def _reference_forward(params, question, num_layers, hidden_size,
                       matmul_dtype=jnp.float32):
    """PyTorch-equivalent forward. matmul_dtype=bf16 reproduces the kernel's MXU
    operand precision (tight check); fp32 is the exact original module."""
    def mm(a, b):
        return jnp.dot(a.astype(matmul_dtype), b.astype(matmul_dtype),
                       preferred_element_type=jnp.float32,
                       precision=jax.lax.Precision.HIGHEST)

    H = hidden_size
    emb = jnp.take(params["embed"], question, axis=0)                 # (B, T, E)
    x = jnp.tanh(jnp.transpose(emb, (1, 0, 2)).astype(jnp.float32))   # (T, B, E)
    T, B, _ = x.shape

    layer_in = x
    h_finals, c_finals = [], []
    for layer in range(num_layers):
        w_ih_t = params[f"w_ih_{layer}"].T
        w_hh_t = params[f"w_hh_{layer}"].T
        b = (params[f"b_ih_{layer}"] + params[f"b_hh_{layer}"])[None, :]

        def step(carry, x_t, w_ih_t=w_ih_t, w_hh_t=w_hh_t, b=b):
            h, c = carry
            gates = mm(x_t, w_ih_t) + b + mm(h, w_hh_t)
            i_g = jax.nn.sigmoid(gates[:, 0:H])
            f_g = jax.nn.sigmoid(gates[:, H:2 * H])
            g_g = jnp.tanh(gates[:, 2 * H:3 * H])
            o_g = jax.nn.sigmoid(gates[:, 3 * H:4 * H])
            c_new = f_g * c + i_g * g_g
            h_new = o_g * jnp.tanh(c_new)
            return (h_new, c_new), h_new

        init = (jnp.zeros((B, H), jnp.float32),
                jnp.zeros((B, H), jnp.float32))
        (h_f, c_f), h_seq = jax.lax.scan(step, init, layer_in)
        h_finals.append(h_f)
        c_finals.append(c_f)
        layer_in = h_seq

    feat = jnp.concatenate(
        [jnp.concatenate([h_finals[l], c_finals[l]], axis=1)
         for l in range(num_layers)], axis=1)
    return mm(jnp.tanh(feat), params["fc_w"].T) + params["fc_b"][None, :]


# ---------------------------------- Main -------------------------------------

if __name__ == "__main__":
    QST_VOCAB = 30
    WORD_EMBED = 32
    EMBED = 32
    NUM_LAYERS = 2
    HIDDEN = 32
    B, T = 2, 8

    key = jax.random.PRNGKey(0)
    k_params, k_q = jax.random.split(key)
    params = init_params(k_params, QST_VOCAB, WORD_EMBED, EMBED,
                         NUM_LAYERS, HIDDEN)
    question = jax.random.randint(k_q, (B, T), 0, QST_VOCAB, dtype=jnp.int32)

    kparams = prepare_kernel_params(params, NUM_LAYERS)   # one-time weight prep

    fwd = jax.jit(functools.partial(qst_lstm_encoder_forward,
                                    num_layers=NUM_LAYERS,
                                    hidden_size=HIDDEN))
    out = jax.block_until_ready(fwd(kparams, question))
    assert out.shape == (B, EMBED), out.shape

    # Tight check vs a reference using the SAME bf16 matmul-operand precision.
    ref_matched = _reference_forward(params, question, NUM_LAYERS, HIDDEN,
                                     matmul_dtype=jnp.bfloat16)
    err_matched = float(jnp.max(jnp.abs(out - ref_matched)))
    assert err_matched < 5e-3, f"mismatch vs matched-precision ref: {err_matched}"

    # Sanity check vs the exact fp32 module (bf16 MXU operands perturb numerics).
    ref_f32 = _reference_forward(params, question, NUM_LAYERS, HIDDEN,
                                 matmul_dtype=jnp.float32)
    err_f32 = float(jnp.max(jnp.abs(out - ref_f32)))
    assert err_f32 < 5e-2, f"mismatch vs fp32 reference: {err_f32}"

    print("KERNEL_OK")
</pallas_src>

<mosaic_0001>
module attributes {stable_mosaic.version = 11 : i64} {
  func.func @_fused_qst_kernel(%arg0: memref<2x8xi32, #tpu.memory_space<smem>>, %arg1: memref<30x1x32xf32, #tpu.memory_space<vmem>>, %arg2: memref<32x128xbf16, #tpu.memory_space<vmem>>, %arg3: memref<32x256xbf16, #tpu.memory_space<vmem>>, %arg4: memref<1x128xf32, #tpu.memory_space<vmem>>, %arg5: memref<32x128xbf16, #tpu.memory_space<vmem>>, %arg6: memref<1x128xf32, #tpu.memory_space<vmem>>, %arg7: memref<128x32xbf16, #tpu.memory_space<vmem>>, %arg8: memref<1x32xf32, #tpu.memory_space<vmem>>, %arg9: memref<2x32xf32, #tpu.memory_space<vmem>>) attributes {dimension_semantics = [], scalar_prefetch = 0 : i64, scratch_operands = 0 : i64, tpu.core_type = #tpu.core_type<tc>} {
    %c0 = arith.constant 0 : index
    %c0_0 = arith.constant 0 : index
    %0 = memref.load %arg0[%c0, %c0_0] : memref<2x8xi32, #tpu.memory_space<smem>>
    %1 = arith.index_cast %0 : i32 to index
    %c0_1 = arith.constant 0 : index
    %c0_2 = arith.constant 0 : index
    %2 = vector.load %arg1[%1, %c0_1, %c0_2] : memref<30x1x32xf32, #tpu.memory_space<vmem>>, vector<1x1x32xf32>
    %3 = vector.shape_cast %2 : vector<1x1x32xf32> to vector<1x32xf32>
    %c1 = arith.constant 1 : index
    %c0_3 = arith.constant 0 : index
    %4 = memref.load %arg0[%c1, %c0_3] : memref<2x8xi32, #tpu.memory_space<smem>>
    %5 = arith.index_cast %4 : i32 to index
    %c0_4 = arith.constant 0 : index
    %c0_5 = arith.constant 0 : index
    %6 = vector.load %arg1[%5, %c0_4, %c0_5] : memref<30x1x32xf32, #tpu.memory_space<vmem>>, vector<1x1x32xf32>
    %7 = vector.shape_cast %6 : vector<1x1x32xf32> to vector<1x32xf32>
    %c0_6 = arith.constant 0 : index
    %c1_7 = arith.constant 1 : index
    %8 = memref.load %arg0[%c0_6, %c1_7] : memref<2x8xi32, #tpu.memory_space<smem>>
    %9 = arith.index_cast %8 : i32 to index
    %c0_8 = arith.constant 0 : index
    %c0_9 = arith.constant 0 : index
    %10 = vector.load %arg1[%9, %c0_8, %c0_9] : memref<30x1x32xf32, #tpu.memory_space<vmem>>, vector<1x1x32xf32>
    %11 = vector.shape_cast %10 : vector<1x1x32xf32> to vector<1x32xf32>
    %c1_10 = arith.constant 1 : index
    %c1_11 = arith.constant 1 : index
    %12 = memref.load %arg0[%c1_10, %c1_11] : memref<2x8xi32, #tpu.memory_space<smem>>
    %13 = arith.index_cast %12 : i32 to index
    %c0_12 = arith.constant 0 : index
    %c0_13 = arith.constant 0 : index
    %14 = vector.load %arg1[%13, %c0_12, %c0_13] : memref<30x1x32xf32, #tpu.memory_space<vmem>>, vector<1x1x32xf32>
    %15 = vector.shape_cast %14 : vector<1x1x32xf32> to vector<1x32xf32>
    %c0_14 = arith.constant 0 : index
    %c2 = arith.constant 2 : index
    %16 = memref.load %arg0[%c0_14, %c2] : memref<2x8xi32, #tpu.memory_space<smem>>
    %17 = arith.index_cast %16 : i32 to index
    %c0_15 = arith.constant 0 : index
    %c0_16 = arith.constant 0 : index
    %18 = vector.load %arg1[%17, %c0_15, %c0_16] : memref<30x1x32xf32, #tpu.memory_space<vmem>>, vector<1x1x32xf32>
    %19 = vector.shape_cast %18 : vector<1x1x32xf32> to vector<1x32xf32>
    %c1_17 = arith.constant 1 : index
    %c2_18 = arith.constant 2 : index
    %20 = memref.load %arg0[%c1_17, %c2_18] : memref<2x8xi32, #tpu.memory_space<smem>>
    %21 = arith.index_cast %20 : i32 to index
    %c0_19 = arith.constant 0 : index
    %c0_20 = arith.constant 0 : index
    %22 = vector.load %arg1[%21, %c0_19, %c0_20] : memref<30x1x32xf32, #tpu.memory_space<vmem>>, vector<1x1x32xf32>
    %23 = vector.shape_cast %22 : vector<1x1x32xf32> to vector<1x32xf32>
    %c0_21 = arith.constant 0 : index
    %c3 = arith.constant 3 : index
    %24 = memref.load %arg0[%c0_21, %c3] : memref<2x8xi32, #tpu.memory_space<smem>>
    %25 = arith.index_cast %24 : i32 to index
    %c0_22 = arith.constant 0 : index
    %c0_23 = arith.constant 0 : index
    %26 = vector.load %arg1[%25, %c0_22, %c0_23] : memref<30x1x32xf32, #tpu.memory_space<vmem>>, vector<1x1x32xf32>
    %27 = vector.shape_cast %26 : vector<1x1x32xf32> to vector<1x32xf32>
    %c1_24 = arith.constant 1 : index
    %c3_25 = arith.constant 3 : index
    %28 = memref.load %arg0[%c1_24, %c3_25] : memref<2x8xi32, #tpu.memory_space<smem>>
    %29 = arith.index_cast %28 : i32 to index
    %c0_26 = arith.constant 0 : index
    %c0_27 = arith.constant 0 : index
    %30 = vector.load %arg1[%29, %c0_26, %c0_27] : memref<30x1x32xf32, #tpu.memory_space<vmem>>, vector<1x1x32xf32>
    %31 = vector.shape_cast %30 : vector<1x1x32xf32> to vector<1x32xf32>
    %c0_28 = arith.constant 0 : index
    %c4 = arith.constant 4 : index
    %32 = memref.load %arg0[%c0_28, %c4] : memref<2x8xi32, #tpu.memory_space<smem>>
    %33 = arith.index_cast %32 : i32 to index
    %c0_29 = arith.constant 0 : index
    %c0_30 = arith.constant 0 : index
    %34 = vector.load %arg1[%33, %c0_29, %c0_30] : memref<30x1x32xf32, #tpu.memory_space<vmem>>, vector<1x1x32xf32>
    %35 = vector.shape_cast %34 : vector<1x1x32xf32> to vector<1x32xf32>
    %c1_31 = arith.constant 1 : index
    %c4_32 = arith.constant 4 : index
    %36 = memref.load %arg0[%c1_31, %c4_32] : memref<2x8xi32, #tpu.memory_space<smem>>
    %37 = arith.index_cast %36 : i32 to index
    %c0_33 = arith.constant 0 : index
    %c0_34 = arith.constant 0 : index
    %38 = vector.load %arg1[%37, %c0_33, %c0_34] : memref<30x1x32xf32, #tpu.memory_space<vmem>>, vector<1x1x32xf32>
    %39 = vector.shape_cast %38 : vector<1x1x32xf32> to vector<1x32xf32>
    %c0_35 = arith.constant 0 : index
    %c5 = arith.constant 5 : index
    %40 = memref.load %arg0[%c0_35, %c5] : memref<2x8xi32, #tpu.memory_space<smem>>
    %41 = arith.index_cast %40 : i32 to index
    %c0_36 = arith.constant 0 : index
    %c0_37 = arith.constant 0 : index
    %42 = vector.load %arg1[%41, %c0_36, %c0_37] : memref<30x1x32xf32, #tpu.memory_space<vmem>>, vector<1x1x32xf32>
    %43 = vector.shape_cast %42 : vector<1x1x32xf32> to vector<1x32xf32>
    %c1_38 = arith.constant 1 : index
    %c5_39 = arith.constant 5 : index
    %44 = memref.load %arg0[%c1_38, %c5_39] : memref<2x8xi32, #tpu.memory_space<smem>>
    %45 = arith.index_cast %44 : i32 to index
    %c0_40 = arith.constant 0 : index
    %c0_41 = arith.constant 0 : index
    %46 = vector.load %arg1[%45, %c0_40, %c0_41] : memref<30x1x32xf32, #tpu.memory_space<vmem>>, vector<1x1x32xf32>
    %47 = vector.shape_cast %46 : vector<1x1x32xf32> to vector<1x32xf32>
    %c0_42 = arith.constant 0 : index
    %c6 = arith.constant 6 : index
    %48 = memref.load %arg0[%c0_42, %c6] : memref<2x8xi32, #tpu.memory_space<smem>>
    %49 = arith.index_cast %48 : i32 to index
    %c0_43 = arith.constant 0 : index
    %c0_44 = arith.constant 0 : index
    %50 = vector.load %arg1[%49, %c0_43, %c0_44] : memref<30x1x32xf32, #tpu.memory_space<vmem>>, vector<1x1x32xf32>
    %51 = vector.shape_cast %50 : vector<1x1x32xf32> to vector<1x32xf32>
    %c1_45 = arith.constant 1 : index
    %c6_46 = arith.constant 6 : index
    %52 = memref.load %arg0[%c1_45, %c6_46] : memref<2x8xi32, #tpu.memory_space<smem>>
    %53 = arith.index_cast %52 : i32 to index
    %c0_47 = arith.constant 0 : index
    %c0_48 = arith.constant 0 : index
    %54 = vector.load %arg1[%53, %c0_47, %c0_48] : memref<30x1x32xf32, #tpu.memory_space<vmem>>, vector<1x1x32xf32>
    %55 = vector.shape_cast %54 : vector<1x1x32xf32> to vector<1x32xf32>
    %c0_49 = arith.constant 0 : index
    %c7 = arith.constant 7 : index
    %56 = memref.load %arg0[%c0_49, %c7] : memref<2x8xi32, #tpu.memory_space<smem>>
    %57 = arith.index_cast %56 : i32 to index
    %c0_50 = arith.constant 0 : index
    %c0_51 = arith.constant 0 : index
    %58 = vector.load %arg1[%57, %c0_50, %c0_51] : memref<30x1x32xf32, #tpu.memory_space<vmem>>, vector<1x1x32xf32>
    %59 = vector.shape_cast %58 : vector<1x1x32xf32> to vector<1x32xf32>
    %c1_52 = arith.constant 1 : index
    %c7_53 = arith.constant 7 : index
    %60 = memref.load %arg0[%c1_52, %c7_53] : memref<2x8xi32, #tpu.memory_space<smem>>
    %61 = arith.index_cast %60 : i32 to index
    %c0_54 = arith.constant 0 : index
    %c0_55 = arith.constant 0 : index
    %62 = vector.load %arg1[%61, %c0_54, %c0_55] : memref<30x1x32xf32, #tpu.memory_space<vmem>>, vector<1x1x32xf32>
    %63 = vector.shape_cast %62 : vector<1x1x32xf32> to vector<1x32xf32>
    %64 = tpu.concatenate %3, %7, %11, %15, %19, %23, %27, %31, %35, %39, %43, %47, %51, %55, %59, %63 in 0 : vector<1x32xf32>, vector<1x32xf32>, vector<1x32xf32>, vector<1x32xf32>, vector<1x32xf32>, vector<1x32xf32>, vector<1x32xf32>, vector<1x32xf32>, vector<1x32xf32>, vector<1x32xf32>, vector<1x32xf32>, vector<1x32xf32>, vector<1x32xf32>, vector<1x32xf32>, vector<1x32xf32>, vector<1x32xf32> -> vector<16x32xf32>
    %65 = math.tanh %64 : vector<16x32xf32>
    %c0_56 = arith.constant 0 : index
    %c0_57 = arith.constant 0 : index
    %66 = vector.load %arg4[%c0_56, %c0_57] : memref<1x128xf32, #tpu.memory_space<vmem>>, vector<1x128xf32>
    %67 = arith.truncf %65 : vector<16x32xf32> to vector<16x32xbf16>
    %c0_58 = arith.constant 0 : index
    %c0_59 = arith.constant 0 : index
    %68 = vector.load %arg2[%c0_58, %c0_59] : memref<32x128xbf16, #tpu.memory_space<vmem>>, vector<32x128xbf16>
    %cst = arith.constant dense<0.000000e+00> : vector<16x128xf32>
    %69 = tpu.matmul %67, %68, %cst {dimension_numbers = #tpu.dot_dimension_numbers<[1], [0], [0], [1], [0, 0, 1, 1], [], []>} : vector<16x32xbf16>, vector<32x128xbf16>, vector<16x128xf32> -> vector<16x128xf32>
    %70 = vector.broadcast %66 : vector<1x128xf32> to vector<16x128xf32>
    %71 = arith.addf %69, %70 : vector<16x128xf32>
    %72 = vector.extract_strided_slice %71 {offsets = [0, 0], sizes = [2, 128], strides = [1, 1]} : vector<16x128xf32> to vector<2x128xf32>
    %73 = vector.extract_strided_slice %71 {offsets = [2, 0], sizes = [2, 128], strides = [1, 1]} : vector<16x128xf32> to vector<2x128xf32>
    %74 = vector.extract_strided_slice %71 {offsets = [4, 0], sizes = [2, 128], strides = [1, 1]} : vector<16x128xf32> to vector<2x128xf32>
    %75 = vector.extract_strided_slice %71 {offsets = [6, 0], sizes = [2, 128], strides = [1, 1]} : vector<16x128xf32> to vector<2x128xf32>
    %76 = vector.extract_strided_slice %71 {offsets = [8, 0], sizes = [2, 128], strides = [1, 1]} : vector<16x128xf32> to vector<2x128xf32>
    %77 = vector.extract_strided_slice %71 {offsets = [10, 0], sizes = [2, 128], strides = [1, 1]} : vector<16x128xf32> to vector<2x128xf32>
    %78 = vector.extract_strided_slice %71 {offsets = [12, 0], sizes = [2, 128], strides = [1, 1]} : vector<16x128xf32> to vector<2x128xf32>
    %79 = vector.extract_strided_slice %71 {offsets = [14, 0], sizes = [2, 128], strides = [1, 1]} : vector<16x128xf32> to vector<2x128xf32>
    %c0_60 = arith.constant 0 : index
    %c0_61 = arith.constant 0 : index
    %80 = vector.load %arg3[%c0_60, %c0_61] : memref<32x256xbf16, #tpu.memory_space<vmem>>, vector<32x256xbf16>
    %c0_62 = arith.constant 0 : index
    %c0_63 = arith.constant 0 : index
    %81 = vector.load %arg6[%c0_62, %c0_63] : memref<1x128xf32, #tpu.memory_space<vmem>>, vector<1x128xf32>
    %cst_64 = arith.constant 0.000000e+00 : f32
    %82 = vector.broadcast %cst_64 : f32 to vector<2x32xf32>
    %cst_65 = arith.constant 0.000000e+00 : f32
    %83 = vector.broadcast %cst_65 : f32 to vector<2x128xf32>
    %84 = arith.addf %72, %83 : vector<2x128xf32>
    %85 = arith.negf %84 : vector<2x128xf32>
    %86 = math.exp %85 : vector<2x128xf32>
    %cst_66 = arith.constant 1.000000e+00 : f32
    %87 = vector.broadcast %cst_66 : f32 to vector<2x128xf32>
    %88 = arith.addf %87, %86 : vector<2x128xf32>
    %89 = arith.divf %87, %88 : vector<2x128xf32>
    %90 = math.tanh %84 : vector<2x128xf32>
    %91 = vector.extract_strided_slice %89 {offsets = [0, 0], sizes = [2, 32], strides = [1, 1]} : vector<2x128xf32> to vector<2x32xf32>
    %92 = vector.extract_strided_slice %89 {offsets = [0, 32], sizes = [2, 32], strides = [1, 1]} : vector<2x128xf32> to vector<2x32xf32>
    %93 = vector.extract_strided_slice %90 {offsets = [0, 64], sizes = [2, 32], strides = [1, 1]} : vector<2x128xf32> to vector<2x32xf32>
    %94 = vector.extract_strided_slice %89 {offsets = [0, 96], sizes = [2, 32], strides = [1, 1]} : vector<2x128xf32> to vector<2x32xf32>
    %95 = arith.mulf %92, %82 : vector<2x32xf32>
    %96 = arith.mulf %91, %93 : vector<2x32xf32>
    %97 = arith.addf %95, %96 : vector<2x32xf32>
    %98 = math.tanh %97 : vector<2x32xf32>
    %99 = arith.mulf %94, %98 : vector<2x32xf32>
    %100 = arith.truncf %99 : vector<2x32xf32> to vector<2x32xbf16>
    %cst_67 = arith.constant dense<0.000000e+00> : vector<2x256xf32>
    %101 = tpu.matmul %100, %80, %cst_67 {dimension_numbers = #tpu.dot_dimension_numbers<[1], [0], [0], [1], [0, 0, 1, 1], [], []>} : vector<2x32xbf16>, vector<32x256xbf16>, vector<2x256xf32> -> vector<2x256xf32>
    %102 = vector.extract_strided_slice %101 {offsets = [0, 0], sizes = [2, 128], strides = [1, 1]} : vector<2x256xf32> to vector<2x128xf32>
    %103 = vector.extract_strided_slice %101 {offsets = [0, 128], sizes = [2, 128], strides = [1, 1]} : vector<2x256xf32> to vector<2x128xf32>
    %104 = vector.broadcast %81 : vector<1x128xf32> to vector<2x128xf32>
    %105 = arith.addf %103, %104 : vector<2x128xf32>
    %106 = arith.addf %73, %102 : vector<2x128xf32>
    %107 = arith.negf %106 : vector<2x128xf32>
    %108 = math.exp %107 : vector<2x128xf32>
    %cst_68 = arith.constant 1.000000e+00 : f32
    %109 = vector.broadcast %cst_68 : f32 to vector<2x128xf32>
    %110 = arith.addf %109, %108 : vector<2x128xf32>
    %111 = arith.divf %109, %110 : vector<2x128xf32>
    %112 = math.tanh %106 : vector<2x128xf32>
    %113 = vector.extract_strided_slice %111 {offsets = [0, 0], sizes = [2, 32], strides = [1, 1]} : vector<2x128xf32> to vector<2x32xf32>
    %114 = vector.extract_strided_slice %111 {offsets = [0, 32], sizes = [2, 32], strides = [1, 1]} : vector<2x128xf32> to vector<2x32xf32>
    %115 = vector.extract_strided_slice %112 {offsets = [0, 64], sizes = [2, 32], strides = [1, 1]} : vector<2x128xf32> to vector<2x32xf32>
    %116 = vector.extract_strided_slice %111 {offsets = [0, 96], sizes = [2, 32], strides = [1, 1]} : vector<2x128xf32> to vector<2x32xf32>
    %117 = arith.mulf %114, %97 : vector<2x32xf32>
    %118 = arith.mulf %113, %115 : vector<2x32xf32>
    %119 = arith.addf %117, %118 : vector<2x32xf32>
    %120 = math.tanh %119 : vector<2x32xf32>
    %121 = arith.mulf %116, %120 : vector<2x32xf32>
    %122 = arith.truncf %121 : vector<2x32xf32> to vector<2x32xbf16>
    %cst_69 = arith.constant dense<0.000000e+00> : vector<2x256xf32>
    %123 = tpu.matmul %122, %80, %cst_69 {dimension_numbers = #tpu.dot_dimension_numbers<[1], [0], [0], [1], [0, 0, 1, 1], [], []>} : vector<2x32xbf16>, vector<32x256xbf16>, vector<2x256xf32> -> vector<2x256xf32>
    %124 = vector.extract_strided_slice %123 {offsets = [0, 0], sizes = [2, 128], strides = [1, 1]} : vector<2x256xf32> to vector<2x128xf32>
    %125 = vector.extract_strided_slice %123 {offsets = [0, 128], sizes = [2, 128], strides = [1, 1]} : vector<2x256xf32> to vector<2x128xf32>
    %126 = vector.broadcast %81 : vector<1x128xf32> to vector<2x128xf32>
    %127 = arith.addf %125, %126 : vector<2x128xf32>
    %128 = arith.addf %74, %124 : vector<2x128xf32>
    %129 = arith.negf %128 : vector<2x128xf32>
    %130 = math.exp %129 : vector<2x128xf32>
    %cst_70 = arith.constant 1.000000e+00 : f32
    %131 = vector.broadcast %cst_70 : f32 to vector<2x128xf32>
    %132 = arith.addf %131, %130 : vector<2x128xf32>
    %133 = arith.divf %131, %132 : vector<2x128xf32>
    %134 = math.tanh %128 : vector<2x128xf32>
    %135 = vector.extract_strided_slice %133 {offsets = [0, 0], sizes = [2, 32], strides = [1, 1]} : vector<2x128xf32> to vector<2x32xf32>
    %136 = vector.extract_strided_slice %133 {offsets = [0, 32], sizes = [2, 32], strides = [1, 1]} : vector<2x128xf32> to vector<2x32xf32>
    %137 = vector.extract_strided_slice %134 {offsets = [0, 64], sizes = [2, 32], strides = [1, 1]} : vector<2x128xf32> to vector<2x32xf32>
    %138 = vector.extract_strided_slice %133 {offsets = [0, 96], sizes = [2, 32], strides = [1, 1]} : vector<2x128xf32> to vector<2x32xf32>
    %139 = arith.mulf %136, %119 : vector<2x32xf32>
    %140 = arith.mulf %135, %137 : vector<2x32xf32>
    %141 = arith.addf %139, %140 : vector<2x32xf32>
    %142 = math.tanh %141 : vector<2x32xf32>
    %143 = arith.mulf %138, %142 : vector<2x32xf32>
    %144 = arith.truncf %143 : vector<2x32xf32> to vector<2x32xbf16>
    %cst_71 = arith.constant dense<0.000000e+00> : vector<2x256xf32>
    %145 = tpu.matmul %144, %80, %cst_71 {dimension_numbers = #tpu.dot_dimension_numbers<[1], [0], [0], [1], [0, 0, 1, 1], [], []>} : vector<2x32xbf16>, vector<32x256xbf16>, vector<2x256xf32> -> vector<2x256xf32>
    %146 = vector.extract_strided_slice %145 {offsets = [0, 0], sizes = [2, 128], strides = [1, 1]} : vector<2x256xf32> to vector<2x128xf32>
    %147 = vector.extract_strided_slice %145 {offsets = [0, 128], sizes = [2, 128], strides = [1, 1]} : vector<2x256xf32> to vector<2x128xf32>
    %148 = vector.broadcast %81 : vector<1x128xf32> to vector<2x128xf32>
    %149 = arith.addf %147, %148 : vector<2x128xf32>
    %150 = arith.addf %75, %146 : vector<2x128xf32>
    %151 = arith.negf %150 : vector<2x128xf32>
    %152 = math.exp %151 : vector<2x128xf32>
    %cst_72 = arith.constant 1.000000e+00 : f32
    %153 = vector.broadcast %cst_72 : f32 to vector<2x128xf32>
    %154 = arith.addf %153, %152 : vector<2x128xf32>
    %155 = arith.divf %153, %154 : vector<2x128xf32>
    %156 = math.tanh %150 : vector<2x128xf32>
    %157 = vector.extract_strided_slice %155 {offsets = [0, 0], sizes = [2, 32], strides = [1, 1]} : vector<2x128xf32> to vector<2x32xf32>
    %158 = vector.extract_strided_slice %155 {offsets = [0, 32], sizes = [2, 32], strides = [1, 1]} : vector<2x128xf32> to vector<2x32xf32>
    %159 = vector.extract_strided_slice %156 {offsets = [0, 64], sizes = [2, 32], strides = [1, 1]} : vector<2x128xf32> to vector<2x32xf32>
    %160 = vector.extract_strided_slice %155 {offsets = [0, 96], sizes = [2, 32], strides = [1, 1]} : vector<2x128xf32> to vector<2x32xf32>
    %161 = arith.mulf %158, %141 : vector<2x32xf32>
    %162 = arith.mulf %157, %159 : vector<2x32xf32>
    %163 = arith.addf %161, %162 : vector<2x32xf32>
    %164 = math.tanh %163 : vector<2x32xf32>
    %165 = arith.mulf %160, %164 : vector<2x32xf32>
    %166 = arith.truncf %165 : vector<2x32xf32> to vector<2x32xbf16>
    %cst_73 = arith.constant dense<0.000000e+00> : vector<2x256xf32>
    %167 = tpu.matmul %166, %80, %cst_73 {dimension_numbers = #tpu.dot_dimension_numbers<[1], [0], [0], [1], [0, 0, 1, 1], [], []>} : vector<2x32xbf16>, vector<32x256xbf16>, vector<2x256xf32> -> vector<2x256xf32>
    %168 = vector.extract_strided_slice %167 {offsets = [0, 0], sizes = [2, 128], strides = [1, 1]} : vector<2x256xf32> to vector<2x128xf32>
    %169 = vector.extract_strided_slice %167 {offsets = [0, 128], sizes = [2, 128], strides = [1, 1]} : vector<2x256xf32> to vector<2x128xf32>
    %170 = vector.broadcast %81 : vector<1x128xf32> to vector<2x128xf32>
    %171 = arith.addf %169, %170 : vector<2x128xf32>
    %172 = arith.addf %76, %168 : vector<2x128xf32>
    %173 = arith.negf %172 : vector<2x128xf32>
    %174 = math.exp %173 : vector<2x128xf32>
    %cst_74 = arith.constant 1.000000e+00 : f32
    %175 = vector.broadcast %cst_74 : f32 to vector<2x128xf32>
    %176 = arith.addf %175, %174 : vector<2x128xf32>
    %177 = arith.divf %175, %176 : vector<2x128xf32>
    %178 = math.tanh %172 : vector<2x128xf32>
    %179 = vector.extract_strided_slice %177 {offsets = [0, 0], sizes = [2, 32], strides = [1, 1]} : vector<2x128xf32> to vector<2x32xf32>
    %180 = vector.extract_strided_slice %177 {offsets = [0, 32], sizes = [2, 32], strides = [1, 1]} : vector<2x128xf32> to vector<2x32xf32>
    %181 = vector.extract_strided_slice %178 {offsets = [0, 64], sizes = [2, 32], strides = [1, 1]} : vector<2x128xf32> to vector<2x32xf32>
    %182 = vector.extract_strided_slice %177 {offsets = [0, 96], sizes = [2, 32], strides = [1, 1]} : vector<2x128xf32> to vector<2x32xf32>
    %183 = arith.mulf %180, %163 : vector<2x32xf32>
    %184 = arith.mulf %179, %181 : vector<2x32xf32>
    %185 = arith.addf %183, %184 : vector<2x32xf32>
    %186 = math.tanh %185 : vector<2x32xf32>
    %187 = arith.mulf %182, %186 : vector<2x32xf32>
    %188 = arith.truncf %187 : vector<2x32xf32> to vector<2x32xbf16>
    %cst_75 = arith.constant dense<0.000000e+00> : vector<2x256xf32>
    %189 = tpu.matmul %188, %80, %cst_75 {dimension_numbers = #tpu.dot_dimension_numbers<[1], [0], [0], [1], [0, 0, 1, 1], [], []>} : vector<2x32xbf16>, vector<32x256xbf16>, vector<2x256xf32> -> vector<2x256xf32>
    %190 = vector.extract_strided_slice %189 {offsets = [0, 0], sizes = [2, 128], strides = [1, 1]} : vector<2x256xf32> to vector<2x128xf32>
    %191 = vector.extract_strided_slice %189 {offsets = [0, 128], sizes = [2, 128], strides = [1, 1]} : vector<2x256xf32> to vector<2x128xf32>
    %192 = vector.broadcast %81 : vector<1x128xf32> to vector<2x128xf32>
    %193 = arith.addf %191, %192 : vector<2x128xf32>
    %194 = arith.addf %77, %190 : vector<2x128xf32>
    %195 = arith.negf %194 : vector<2x128xf32>
    %196 = math.exp %195 : vector<2x128xf32>
    %cst_76 = arith.constant 1.000000e+00 : f32
    %197 = vector.broadcast %cst_76 : f32 to vector<2x128xf32>
    %198 = arith.addf %197, %196 : vector<2x128xf32>
    %199 = arith.divf %197, %198 : vector<2x128xf32>
    %200 = math.tanh %194 : vector<2x128xf32>
    %201 = vector.extract_strided_slice %199 {offsets = [0, 0], sizes = [2, 32], strides = [1, 1]} : vector<2x128xf32> to vector<2x32xf32>
    %202 = vector.extract_strided_slice %199 {offsets = [0, 32], sizes = [2, 32], strides = [1, 1]} : vector<2x128xf32> to vector<2x32xf32>
    %203 = vector.extract_strided_slice %200 {offsets = [0, 64], sizes = [2, 32], strides = [1, 1]} : vector<2x128xf32> to vector<2x32xf32>
    %204 = vector.extract_strided_slice %199 {offsets = [0, 96], sizes = [2, 32], strides = [1, 1]} : vector<2x128xf32> to vector<2x32xf32>
    %205 = arith.mulf %202, %185 : vector<2x32xf32>
    %206 = arith.mulf %201, %203 : vector<2x32xf32>
    %207 = arith.addf %205, %206 : vector<2x32xf32>
    %208 = math.tanh %207 : vector<2x32xf32>
    %209 = arith.mulf %204, %208 : vector<2x32xf32>
    %210 = arith.truncf %209 : vector<2x32xf32> to vector<2x32xbf16>
    %cst_77 = arith.constant dense<0.000000e+00> : vector<2x256xf32>
    %211 = tpu.matmul %210, %80, %cst_77 {dimension_numbers = #tpu.dot_dimension_numbers<[1], [0], [0], [1], [0, 0, 1, 1], [], []>} : vector<2x32xbf16>, vector<32x256xbf16>, vector<2x256xf32> -> vector<2x256xf32>
    %212 = vector.extract_strided_slice %211 {offsets = [0, 0], sizes = [2, 128], strides = [1, 1]} : vector<2x256xf32> to vector<2x128xf32>
    %213 = vector.extract_strided_slice %211 {offsets = [0, 128], sizes = [2, 128], strides = [1, 1]} : vector<2x256xf32> to vector<2x128xf32>
    %214 = vector.broadcast %81 : vector<1x128xf32> to vector<2x128xf32>
    %215 = arith.addf %213, %214 : vector<2x128xf32>
    %216 = arith.addf %78, %212 : vector<2x128xf32>
    %217 = arith.negf %216 : vector<2x128xf32>
    %218 = math.exp %217 : vector<2x128xf32>
    %cst_78 = arith.constant 1.000000e+00 : f32
    %219 = vector.broadcast %cst_78 : f32 to vector<2x128xf32>
    %220 = arith.addf %219, %218 : vector<2x128xf32>
    %221 = arith.divf %219, %220 : vector<2x128xf32>
    %222 = math.tanh %216 : vector<2x128xf32>
    %223 = vector.extract_strided_slice %221 {offsets = [0, 0], sizes = [2, 32], strides = [1, 1]} : vector<2x128xf32> to vector<2x32xf32>
    %224 = vector.extract_strided_slice %221 {offsets = [0, 32], sizes = [2, 32], strides = [1, 1]} : vector<2x128xf32> to vector<2x32xf32>
    %225 = vector.extract_strided_slice %222 {offsets = [0, 64], sizes = [2, 32], strides = [1, 1]} : vector<2x128xf32> to vector<2x32xf32>
    %226 = vector.extract_strided_slice %221 {offsets = [0, 96], sizes = [2, 32], strides = [1, 1]} : vector<2x128xf32> to vector<2x32xf32>
    %227 = arith.mulf %224, %207 : vector<2x32xf32>
    %228 = arith.mulf %223, %225 : vector<2x32xf32>
    %229 = arith.addf %227, %228 : vector<2x32xf32>
    %230 = math.tanh %229 : vector<2x32xf32>
    %231 = arith.mulf %226, %230 : vector<2x32xf32>
    %232 = arith.truncf %231 : vector<2x32xf32> to vector<2x32xbf16>
    %cst_79 = arith.constant dense<0.000000e+00> : vector<2x256xf32>
    %233 = tpu.matmul %232, %80, %cst_79 {dimension_numbers = #tpu.dot_dimension_numbers<[1], [0], [0], [1], [0, 0, 1, 1], [], []>} : vector<2x32xbf16>, vector<32x256xbf16>, vector<2x256xf32> -> vector<2x256xf32>
    %234 = vector.extract_strided_slice %233 {offsets = [0, 0], sizes = [2, 128], strides = [1, 1]} : vector<2x256xf32> to vector<2x128xf32>
    %235 = vector.extract_strided_slice %233 {offsets = [0, 128], sizes = [2, 128], strides = [1, 1]} : vector<2x256xf32> to vector<2x128xf32>
    %236 = vector.broadcast %81 : vector<1x128xf32> to vector<2x128xf32>
    %237 = arith.addf %235, %236 : vector<2x128xf32>
    %238 = arith.addf %79, %234 : vector<2x128xf32>
    %239 = arith.negf %238 : vector<2x128xf32>
    %240 = math.exp %239 : vector<2x128xf32>
    %cst_80 = arith.constant 1.000000e+00 : f32
    %241 = vector.broadcast %cst_80 : f32 to vector<2x128xf32>
    %242 = arith.addf %241, %240 : vector<2x128xf32>
    %243 = arith.divf %241, %242 : vector<2x128xf32>
    %244 = math.tanh %238 : vector<2x128xf32>
    %245 = vector.extract_strided_slice %243 {offsets = [0, 0], sizes = [2, 32], strides = [1, 1]} : vector<2x128xf32> to vector<2x32xf32>
    %246 = vector.extract_strided_slice %243 {offsets = [0, 32], sizes = [2, 32], strides = [1, 1]} : vector<2x128xf32> to vector<2x32xf32>
    %247 = vector.extract_strided_slice %244 {offsets = [0, 64], sizes = [2, 32], strides = [1, 1]} : vector<2x128xf32> to vector<2x32xf32>
    %248 = vector.extract_strided_slice %243 {offsets = [0, 96], sizes = [2, 32], strides = [1, 1]} : vector<2x128xf32> to vector<2x32xf32>
    %249 = arith.mulf %246, %229 : vector<2x32xf32>
    %250 = arith.mulf %245, %247 : vector<2x32xf32>
    %251 = arith.addf %249, %250 : vector<2x32xf32>
    %252 = math.tanh %251 : vector<2x32xf32>
    %253 = arith.mulf %248, %252 : vector<2x32xf32>
    %254 = arith.truncf %253 : vector<2x32xf32> to vector<2x32xbf16>
    %cst_81 = arith.constant dense<0.000000e+00> : vector<2x256xf32>
    %255 = tpu.matmul %254, %80, %cst_81 {dimension_numbers = #tpu.dot_dimension_numbers<[1], [0], [0], [1], [0, 0, 1, 1], [], []>} : vector<2x32xbf16>, vector<32x256xbf16>, vector<2x256xf32> -> vector<2x256xf32>
    %256 = vector.extract_strided_slice %255 {offsets = [0, 128], sizes = [2, 128], strides = [1, 1]} : vector<2x256xf32> to vector<2x128xf32>
    %257 = vector.broadcast %81 : vector<1x128xf32> to vector<2x128xf32>
    %258 = arith.addf %256, %257 : vector<2x128xf32>
    %c0_82 = arith.constant 0 : index
    %c0_83 = arith.constant 0 : index
    %259 = vector.load %arg5[%c0_82, %c0_83] : memref<32x128xbf16, #tpu.memory_space<vmem>>, vector<32x128xbf16>
    %cst_84 = arith.constant 0.000000e+00 : f32
    %260 = vector.broadcast %cst_84 : f32 to vector<2x32xf32>
    %cst_85 = arith.constant 0.000000e+00 : f32
    %261 = vector.broadcast %cst_85 : f32 to vector<2x128xf32>
    %262 = arith.addf %105, %261 : vector<2x128xf32>
    %263 = arith.negf %262 : vector<2x128xf32>
    %264 = math.exp %263 : vector<2x128xf32>
    %cst_86 = arith.constant 1.000000e+00 : f32
    %265 = vector.broadcast %cst_86 : f32 to vector<2x128xf32>
    %266 = arith.addf %265, %264 : vector<2x128xf32>
    %267 = arith.divf %265, %266 : vector<2x128xf32>
    %268 = math.tanh %262 : vector<2x128xf32>
    %269 = vector.extract_strided_slice %267 {offsets = [0, 0], sizes = [2, 32], strides = [1, 1]} : vector<2x128xf32> to vector<2x32xf32>
    %270 = vector.extract_strided_slice %267 {offsets = [0, 32], sizes = [2, 32], strides = [1, 1]} : vector<2x128xf32> to vector<2x32xf32>
    %271 = vector.extract_strided_slice %268 {offsets = [0, 64], sizes = [2, 32], strides = [1, 1]} : vector<2x128xf32> to vector<2x32xf32>
    %272 = vector.extract_strided_slice %267 {offsets = [0, 96], sizes = [2, 32], strides = [1, 1]} : vector<2x128xf32> to vector<2x32xf32>
    %273 = arith.mulf %270, %260 : vector<2x32xf32>
    %274 = arith.mulf %269, %271 : vector<2x32xf32>
    %275 = arith.addf %273, %274 : vector<2x32xf32>
    %276 = math.tanh %275 : vector<2x32xf32>
    %277 = arith.mulf %272, %276 : vector<2x32xf32>
    %278 = arith.truncf %277 : vector<2x32xf32> to vector<2x32xbf16>
    %cst_87 = arith.constant dense<0.000000e+00> : vector<2x128xf32>
    %279 = tpu.matmul %278, %259, %cst_87 {dimension_numbers = #tpu.dot_dimension_numbers<[1], [0], [0], [1], [0, 0, 1, 1], [], []>} : vector<2x32xbf16>, vector<32x128xbf16>, vector<2x128xf32> -> vector<2x128xf32>
    %280 = arith.addf %127, %279 : vector<2x128xf32>
    %281 = arith.negf %280 : vector<2x128xf32>
    %282 = math.exp %281 : vector<2x128xf32>
    %cst_88 = arith.constant 1.000000e+00 : f32
    %283 = vector.broadcast %cst_88 : f32 to vector<2x128xf32>
    %284 = arith.addf %283, %282 : vector<2x128xf32>
    %285 = arith.divf %283, %284 : vector<2x128xf32>
    %286 = math.tanh %280 : vector<2x128xf32>
    %287 = vector.extract_strided_slice %285 {offsets = [0, 0], sizes = [2, 32], strides = [1, 1]} : vector<2x128xf32> to vector<2x32xf32>
    %288 = vector.extract_strided_slice %285 {offsets = [0, 32], sizes = [2, 32], strides = [1, 1]} : vector<2x128xf32> to vector<2x32xf32>
    %289 = vector.extract_strided_slice %286 {offsets = [0, 64], sizes = [2, 32], strides = [1, 1]} : vector<2x128xf32> to vector<2x32xf32>
    %290 = vector.extract_strided_slice %285 {offsets = [0, 96], sizes = [2, 32], strides = [1, 1]} : vector<2x128xf32> to vector<2x32xf32>
    %291 = arith.mulf %288, %275 : vector<2x32xf32>
    %292 = arith.mulf %287, %289 : vector<2x32xf32>
    %293 = arith.addf %291, %292 : vector<2x32xf32>
    %294 = math.tanh %293 : vector<2x32xf32>
    %295 = arith.mulf %290, %294 : vector<2x32xf32>
    %296 = arith.truncf %295 : vector<2x32xf32> to vector<2x32xbf16>
    %cst_89 = arith.constant dense<0.000000e+00> : vector<2x128xf32>
    %297 = tpu.matmul %296, %259, %cst_89 {dimension_numbers = #tpu.dot_dimension_numbers<[1], [0], [0], [1], [0, 0, 1, 1], [], []>} : vector<2x32xbf16>, vector<32x128xbf16>, vector<2x128xf32> -> vector<2x128xf32>
    %298 = arith.addf %149, %297 : vector<2x128xf32>
    %299 = arith.negf %298 : vector<2x128xf32>
    %300 = math.exp %299 : vector<2x128xf32>
    %cst_90 = arith.constant 1.000000e+00 : f32
    %301 = vector.broadcast %cst_90 : f32 to vector<2x128xf32>
    %302 = arith.addf %301, %300 : vector<2x128xf32>
    %303 = arith.divf %301, %302 : vector<2x128xf32>
    %304 = math.tanh %298 : vector<2x128xf32>
    %305 = vector.extract_strided_slice %303 {offsets = [0, 0], sizes = [2, 32], strides = [1, 1]} : vector<2x128xf32> to vector<2x32xf32>
    %306 = vector.extract_strided_slice %303 {offsets = [0, 32], sizes = [2, 32], strides = [1, 1]} : vector<2x128xf32> to vector<2x32xf32>
    %307 = vector.extract_strided_slice %304 {offsets = [0, 64], sizes = [2, 32], strides = [1, 1]} : vector<2x128xf32> to vector<2x32xf32>
    %308 = vector.extract_strided_slice %303 {offsets = [0, 96], sizes = [2, 32], strides = [1, 1]} : vector<2x128xf32> to vector<2x32xf32>
    %309 = arith.mulf %306, %293 : vector<2x32xf32>
    %310 = arith.mulf %305, %307 : vector<2x32xf32>
    %311 = arith.addf %309, %310 : vector<2x32xf32>
    %312 = math.tanh %311 : vector<2x32xf32>
    %313 = arith.mulf %308, %312 : vector<2x32xf32>
    %314 = arith.truncf %313 : vector<2x32xf32> to vector<2x32xbf16>
    %cst_91 = arith.constant dense<0.000000e+00> : vector<2x128xf32>
    %315 = tpu.matmul %314, %259, %cst_91 {dimension_numbers = #tpu.dot_dimension_numbers<[1], [0], [0], [1], [0, 0, 1, 1], [], []>} : vector<2x32xbf16>, vector<32x128xbf16>, vector<2x128xf32> -> vector<2x128xf32>
    %316 = arith.addf %171, %315 : vector<2x128xf32>
    %317 = arith.negf %316 : vector<2x128xf32>
    %318 = math.exp %317 : vector<2x128xf32>
    %cst_92 = arith.constant 1.000000e+00 : f32
    %319 = vector.broadcast %cst_92 : f32 to vector<2x128xf32>
    %320 = arith.addf %319, %318 : vector<2x128xf32>
    %321 = arith.divf %319, %320 : vector<2x128xf32>
    %322 = math.tanh %316 : vector<2x128xf32>
    %323 = vector.extract_strided_slice %321 {offsets = [0, 0], sizes = [2, 32], strides = [1, 1]} : vector<2x128xf32> to vector<2x32xf32>
    %324 = vector.extract_strided_slice %321 {offsets = [0, 32], sizes = [2, 32], strides = [1, 1]} : vector<2x128xf32> to vector<2x32xf32>
    %325 = vector.extract_strided_slice %322 {offsets = [0, 64], sizes = [2, 32], strides = [1, 1]} : vector<2x128xf32> to vector<2x32xf32>
    %326 = vector.extract_strided_slice %321 {offsets = [0, 96], sizes = [2, 32], strides = [1, 1]} : vector<2x128xf32> to vector<2x32xf32>
    %327 = arith.mulf %324, %311 : vector<2x32xf32>
    %328 = arith.mulf %323, %325 : vector<2x32xf32>
    %329 = arith.addf %327, %328 : vector<2x32xf32>
    %330 = math.tanh %329 : vector<2x32xf32>
    %331 = arith.mulf %326, %330 : vector<2x32xf32>
    %332 = arith.truncf %331 : vector<2x32xf32> to vector<2x32xbf16>
    %cst_93 = arith.constant dense<0.000000e+00> : vector<2x128xf32>
    %333 = tpu.matmul %332, %259, %cst_93 {dimension_numbers = #tpu.dot_dimension_numbers<[1], [0], [0], [1], [0, 0, 1, 1], [], []>} : vector<2x32xbf16>, vector<32x128xbf16>, vector<2x128xf32> -> vector<2x128xf32>
    %334 = arith.addf %193, %333 : vector<2x128xf32>
    %335 = arith.negf %334 : vector<2x128xf32>
    %336 = math.exp %335 : vector<2x128xf32>
    %cst_94 = arith.constant 1.000000e+00 : f32
    %337 = vector.broadcast %cst_94 : f32 to vector<2x128xf32>
    %338 = arith.addf %337, %336 : vector<2x128xf32>
    %339 = arith.divf %337, %338 : vector<2x128xf32>
    %340 = math.tanh %334 : vector<2x128xf32>
    %341 = vector.extract_strided_slice %339 {offsets = [0, 0], sizes = [2, 32], strides = [1, 1]} : vector<2x128xf32> to vector<2x32xf32>
    %342 = vector.extract_strided_slice %339 {offsets = [0, 32], sizes = [2, 32], strides = [1, 1]} : vector<2x128xf32> to vector<2x32xf32>
    %343 = vector.extract_strided_slice %340 {offsets = [0, 64], sizes = [2, 32], strides = [1, 1]} : vector<2x128xf32> to vector<2x32xf32>
    %344 = vector.extract_strided_slice %339 {offsets = [0, 96], sizes = [2, 32], strides = [1, 1]} : vector<2x128xf32> to vector<2x32xf32>
    %345 = arith.mulf %342, %329 : vector<2x32xf32>
    %346 = arith.mulf %341, %343 : vector<2x32xf32>
    %347 = arith.addf %345, %346 : vector<2x32xf32>
    %348 = math.tanh %347 : vector<2x32xf32>
    %349 = arith.mulf %344, %348 : vector<2x32xf32>
    %350 = arith.truncf %349 : vector<2x32xf32> to vector<2x32xbf16>
    %cst_95 = arith.constant dense<0.000000e+00> : vector<2x128xf32>
    %351 = tpu.matmul %350, %259, %cst_95 {dimension_numbers = #tpu.dot_dimension_numbers<[1], [0], [0], [1], [0, 0, 1, 1], [], []>} : vector<2x32xbf16>, vector<32x128xbf16>, vector<2x128xf32> -> vector<2x128xf32>
    %352 = arith.addf %215, %351 : vector<2x128xf32>
    %353 = arith.negf %352 : vector<2x128xf32>
    %354 = math.exp %353 : vector<2x128xf32>
    %cst_96 = arith.constant 1.000000e+00 : f32
    %355 = vector.broadcast %cst_96 : f32 to vector<2x128xf32>
    %356 = arith.addf %355, %354 : vector<2x128xf32>
    %357 = arith.divf %355, %356 : vector<2x128xf32>
    %358 = math.tanh %352 : vector<2x128xf32>
    %359 = vector.extract_strided_slice %357 {offsets = [0, 0], sizes = [2, 32], strides = [1, 1]} : vector<2x128xf32> to vector<2x32xf32>
    %360 = vector.extract_strided_slice %357 {offsets = [0, 32], sizes = [2, 32], strides = [1, 1]} : vector<2x128xf32> to vector<2x32xf32>
    %361 = vector.extract_strided_slice %358 {offsets = [0, 64], sizes = [2, 32], strides = [1, 1]} : vector<2x128xf32> to vector<2x32xf32>
    %362 = vector.extract_strided_slice %357 {offsets = [0, 96], sizes = [2, 32], strides = [1, 1]} : vector<2x128xf32> to vector<2x32xf32>
    %363 = arith.mulf %360, %347 : vector<2x32xf32>
    %364 = arith.mulf %359, %361 : vector<2x32xf32>
    %365 = arith.addf %363, %364 : vector<2x32xf32>
    %366 = math.tanh %365 : vector<2x32xf32>
    %367 = arith.mulf %362, %366 : vector<2x32xf32>
    %368 = arith.truncf %367 : vector<2x32xf32> to vector<2x32xbf16>
    %cst_97 = arith.constant dense<0.000000e+00> : vector<2x128xf32>
    %369 = tpu.matmul %368, %259, %cst_97 {dimension_numbers = #tpu.dot_dimension_numbers<[1], [0], [0], [1], [0, 0, 1, 1], [], []>} : vector<2x32xbf16>, vector<32x128xbf16>, vector<2x128xf32> -> vector<2x128xf32>
    %370 = arith.addf %237, %369 : vector<2x128xf32>
    %371 = arith.negf %370 : vector<2x128xf32>
    %372 = math.exp %371 : vector<2x128xf32>
    %cst_98 = arith.constant 1.000000e+00 : f32
    %373 = vector.broadcast %cst_98 : f32 to vector<2x128xf32>
    %374 = arith.addf %373, %372 : vector<2x128xf32>
    %375 = arith.divf %373, %374 : vector<2x128xf32>
    %376 = math.tanh %370 : vector<2x128xf32>
    %377 = vector.extract_strided_slice %375 {offsets = [0, 0], sizes = [2, 32], strides = [1, 1]} : vector<2x128xf32> to vector<2x32xf32>
    %378 = vector.extract_strided_slice %375 {offsets = [0, 32], sizes = [2, 32], strides = [1, 1]} : vector<2x128xf32> to vector<2x32xf32>
    %379 = vector.extract_strided_slice %376 {offsets = [0, 64], sizes = [2, 32], strides = [1, 1]} : vector<2x128xf32> to vector<2x32xf32>
    %380 = vector.extract_strided_slice %375 {offsets = [0, 96], sizes = [2, 32], strides = [1, 1]} : vector<2x128xf32> to vector<2x32xf32>
    %381 = arith.mulf %378, %365 : vector<2x32xf32>
    %382 = arith.mulf %377, %379 : vector<2x32xf32>
    %383 = arith.addf %381, %382 : vector<2x32xf32>
    %384 = math.tanh %383 : vector<2x32xf32>
    %385 = arith.mulf %380, %384 : vector<2x32xf32>
    %386 = arith.truncf %385 : vector<2x32xf32> to vector<2x32xbf16>
    %cst_99 = arith.constant dense<0.000000e+00> : vector<2x128xf32>
    %387 = tpu.matmul %386, %259, %cst_99 {dimension_numbers = #tpu.dot_dimension_numbers<[1], [0], [0], [1], [0, 0, 1, 1], [], []>} : vector<2x32xbf16>, vector<32x128xbf16>, vector<2x128xf32> -> vector<2x128xf32>
    %388 = arith.addf %258, %387 : vector<2x128xf32>
    %389 = arith.negf %388 : vector<2x128xf32>
    %390 = math.exp %389 : vector<2x128xf32>
    %cst_100 = arith.constant 1.000000e+00 : f32
    %391 = vector.broadcast %cst_100 : f32 to vector<2x128xf32>
    %392 = arith.addf %391, %390 : vector<2x128xf32>
    %393 = arith.divf %391, %392 : vector<2x128xf32>
    %394 = math.tanh %388 : vector<2x128xf32>
    %395 = vector.extract_strided_slice %393 {offsets = [0, 0], sizes = [2, 32], strides = [1, 1]} : vector<2x128xf32> to vector<2x32xf32>
    %396 = vector.extract_strided_slice %393 {offsets = [0, 32], sizes = [2, 32], strides = [1, 1]} : vector<2x128xf32> to vector<2x32xf32>
    %397 = vector.extract_strided_slice %394 {offsets = [0, 64], sizes = [2, 32], strides = [1, 1]} : vector<2x128xf32> to vector<2x32xf32>
    %398 = vector.extract_strided_slice %393 {offsets = [0, 96], sizes = [2, 32], strides = [1, 1]} : vector<2x128xf32> to vector<2x32xf32>
    %399 = arith.mulf %396, %383 : vector<2x32xf32>
    %400 = arith.mulf %395, %397 : vector<2x32xf32>
    %401 = arith.addf %399, %400 : vector<2x32xf32>
    %402 = math.tanh %401 : vector<2x32xf32>
    %403 = arith.mulf %398, %402 : vector<2x32xf32>
    %404 = tpu.concatenate %253, %251, %403, %401 in 1 : vector<2x32xf32>, vector<2x32xf32>, vector<2x32xf32>, vector<2x32xf32> -> vector<2x128xf32>
    %405 = math.tanh %404 : vector<2x128xf32>
    %406 = arith.truncf %405 : vector<2x128xf32> to vector<2x128xbf16>
    %c0_101 = arith.constant 0 : index
    %c0_102 = arith.constant 0 : index
    %407 = vector.load %arg7[%c0_101, %c0_102] : memref<128x32xbf16, #tpu.memory_space<vmem>>, vector<128x32xbf16>
    %cst_103 = arith.constant dense<0.000000e+00> : vector<2x32xf32>
    %408 = tpu.matmul %406, %407, %cst_103 {dimension_numbers = #tpu.dot_dimension_numbers<[1], [0], [0], [1], [0, 0, 1, 1], [], []>} : vector<2x128xbf16>, vector<128x32xbf16>, vector<2x32xf32> -> vector<2x32xf32>
    %c0_104 = arith.constant 0 : index
    %c0_105 = arith.constant 0 : index
    %409 = vector.load %arg8[%c0_104, %c0_105] : memref<1x32xf32, #tpu.memory_space<vmem>>, vector<1x32xf32>
    %410 = vector.broadcast %409 : vector<1x32xf32> to vector<2x32xf32>
    %411 = arith.addf %408, %410 : vector<2x32xf32>
    %c0_106 = arith.constant 0 : index
    %c0_107 = arith.constant 0 : index
    %412 = vector.load %arg9[%c0_106, %c0_107] : memref<2x32xf32, #tpu.memory_space<vmem>>, vector<2x32xf32>
    tpu.vector_store %arg9[%c0_106, %c0_107], %411 {strides = array<i32>} : memref<2x32xf32, #tpu.memory_space<vmem>>, vector<2x32xf32>,
    return
  }
}

</mosaic_0001>

<llo_original>
// kernel: qst_lstm_encoder_forward.1
$region0: #{qst_lstm_encoder_forward.1}
  #allocation0 [shape = 'u32[]', space=smem, size = 0x4, offset = 0x4, fixed_abs, tag = 'smem constant byte address 0x4 - core index']
  #allocation1 [shape = 'u32[144,128]{1,0:T(1,128)}', space=vmem, size = 0x12000, scoped, tag = 'internal scratch']
  %s0 = inlined_call_operand.vmem [shape: s32[2,8], index: 0, kind: input, shape index: {}]
  %s1 = inlined_call_operand.vmem [shape: f32[30,1,32], index: 1, kind: input, shape index: {}]
  %s2 = inlined_call_operand.vmem [shape: bf16[32,128], index: 2, kind: input, shape index: {}]
  %s3 = inlined_call_operand.vmem [shape: bf16[32,256], index: 3, kind: input, shape index: {}]
  %s4 = inlined_call_operand.vmem [shape: f32[1,128], index: 4, kind: input, shape index: {}]
  %s5 = inlined_call_operand.vmem [shape: bf16[32,128], index: 5, kind: input, shape index: {}]
  %s6 = inlined_call_operand.hbm [shape: f32[1,128], index: 6, kind: input, shape index: {}]
  %s7 = inlined_call_operand.vmem [shape: bf16[128,32], index: 7, kind: input, shape index: {}]
  %s8 = inlined_call_operand.hbm [shape: f32[1,32], index: 8, kind: input, shape index: {}]
  %s9 = inlined_call_operand.hbm [shape: f32[2,32], index: 9, kind: output, shape index: {}]
  %s10 = sld [smem:[#allocation0]]
  $region58: #{qst_lstm_encoder_forward.1} parent=0
    _
  %s12 = ssub.s32 1, %s10
  %s13 = scalar_select 0, %s12, %s10
  $region1: #{qst_lstm_encoder_forward.1} parent=0
    #allocation2 [shape = 'u8[1024]{0}', space=smem, size = 0x400, scoped, tag = 'input window, operand 0, single buffered']
    #allocation3 [shape = 's32[1]{0}', space=sflag, size = 0x4, scoped, tag = 'scoped memory for qst_lstm_encoder_forward.1']
    #allocation4 [shape = 's32[1]{0}', space=sflag, size = 0x4, scoped, tag = 'scoped memory for qst_lstm_encoder_forward.1']
    #allocation5 [shape = 's32[1]{0}', space=sflag, size = 0x4, scoped, tag = 'scoped memory for qst_lstm_encoder_forward.1']
    #allocation6 [shape = 'u8[512]{0}', space=vmem, size = 0x400, scoped, tag = 'input window, operand 6, single buffered']
    #allocation7 [shape = 'u8[512]{0}', space=vmem, size = 0x400, scoped, tag = 'input window, operand 8, single buffered']
    #allocation8 [shape = 's32[1]{0}', space=sflag, size = 0x4, scoped, tag = 'scoped memory for qst_lstm_encoder_forward.1']
    #allocation9 [shape = 'u8[1024]{0}', space=vmem, size = 0x400, scoped, tag = 'output window, operand 0, single buffered']
    %14 = vsyncpa [#allocation5], 0
    %15 = vsyncpa [#allocation3], 0
    %16 = vsyncpa [#allocation8], 0
    %17 = vsyncpa [#allocation4], 0
    // Predicated region
    $region2: #{qst_lstm_encoder_forward.1} parent=1 // pred_check
      _
    $region3: #{qst_lstm_encoder_forward.1} parent=1 // pred_check_branch
      %19 = sbr.rel (0) target = $region5
    $region4: #{qst_lstm_encoder_forward.1} parent=1 // pred_region
      %s21 = ssub.s32 32, 32
      %22 = vsyncadd [#allocation5], %s21
      %s24 = sshll.u32 %s0, 4
      %s25 = int_to_ptr.vmem [resolvable:$true] %s24
      %27 = dma.vmem_to_smem %s25, 32, [#allocation2], [#allocation5]
    $region5: #{qst_lstm_encoder_forward.1} parent=1 // pred_fallthru
      _
    // Predicated region
    $region6: #{qst_lstm_encoder_forward.1} parent=1 // pred_check
      _
    $region7: #{qst_lstm_encoder_forward.1} parent=1 // pred_check_branch
      %29 = sbr.rel (0) target = $region9
    $region8: #{qst_lstm_encoder_forward.1} parent=1 // pred_region
      _
    $region9: #{qst_lstm_encoder_forward.1} parent=1 // pred_fallthru
      _
    // Predicated region
    $region10: #{qst_lstm_encoder_forward.1} parent=1 // pred_check
      _
    $region11: #{qst_lstm_encoder_forward.1} parent=1 // pred_check_branch
      %31 = sbr.rel (0) target = $region13
    $region12: #{qst_lstm_encoder_forward.1} parent=1 // pred_region
      _
    $region13: #{qst_lstm_encoder_forward.1} parent=1 // pred_fallthru
      _
    // Predicated region
    $region14: #{qst_lstm_encoder_forward.1} parent=1 // pred_check
      _
    $region15: #{qst_lstm_encoder_forward.1} parent=1 // pred_check_branch
      %33 = sbr.rel (0) target = $region17
    $region16: #{qst_lstm_encoder_forward.1} parent=1 // pred_region
      _
    $region17: #{qst_lstm_encoder_forward.1} parent=1 // pred_fallthru
      _
    // Predicated region
    $region18: #{qst_lstm_encoder_forward.1} parent=1 // pred_check
      _
    $region19: #{qst_lstm_encoder_forward.1} parent=1 // pred_check_branch
      %35 = sbr.rel (0) target = $region21
    $region20: #{qst_lstm_encoder_forward.1} parent=1 // pred_region
      _
    $region21: #{qst_lstm_encoder_forward.1} parent=1 // pred_fallthru
      _
    // Predicated region
    $region22: #{qst_lstm_encoder_forward.1} parent=1 // pred_check
      _
    $region23: #{qst_lstm_encoder_forward.1} parent=1 // pred_check_branch
      %37 = sbr.rel (0) target = $region25
    $region24: #{qst_lstm_encoder_forward.1} parent=1 // pred_region
      _
    $region25: #{qst_lstm_encoder_forward.1} parent=1 // pred_fallthru
      _
    // Predicated region
    $region26: #{qst_lstm_encoder_forward.1} parent=1 // pred_check
      _
    $region27: #{qst_lstm_encoder_forward.1} parent=1 // pred_check_branch
      %39 = sbr.rel (0) target = $region29
    $region28: #{qst_lstm_encoder_forward.1} parent=1 // pred_region
      %s41 = ssub.s32 16, 16
      %42 = vsyncadd [#allocation3], %s41
      %s44 = sshll.u32 [#allocation6], 4
      %s45 = int_to_ptr.vmem [resolvable:$true] %s44
      %47 = dma.hbm_to_vmem [thread:$0]  %s6, 16, %s45, [#allocation3]
    $region29: #{qst_lstm_encoder_forward.1} parent=1 // pred_fallthru
      _
    // Predicated region
    $region30: #{qst_lstm_encoder_forward.1} parent=1 // pred_check
      _
    $region31: #{qst_lstm_encoder_forward.1} parent=1 // pred_check_branch
      %49 = sbr.rel (0) target = $region33
    $region32: #{qst_lstm_encoder_forward.1} parent=1 // pred_region
      _
    $region33: #{qst_lstm_encoder_forward.1} parent=1 // pred_fallthru
      _
    // Predicated region
    $region34: #{qst_lstm_encoder_forward.1} parent=1 // pred_check
      _
    $region35: #{qst_lstm_encoder_forward.1} parent=1 // pred_check_branch
      %51 = sbr.rel (0) target = $region37
    $region36: #{qst_lstm_encoder_forward.1} parent=1 // pred_region
      %s53 = ssub.s32 16, 16
      %54 = vsyncadd [#allocation8], %s53
      %s56 = sshll.u32 [#allocation7], 4
      %s57 = int_to_ptr.vmem [resolvable:$true] %s56
      %59 = dma.hbm_to_vmem [thread:$0]  %s8, 16, %s57, [#allocation8]
    $region37: #{qst_lstm_encoder_forward.1} parent=1 // pred_fallthru
      _
    // Predicated region
    $region38: #{qst_lstm_encoder_forward.1} parent=1 // pred_check
      _
    $region39: #{qst_lstm_encoder_forward.1} parent=1 // pred_check_branch
      %61 = sbr.rel (0) target = $region41
    $region40: #{qst_lstm_encoder_forward.1} parent=1 // pred_region
      %62 = dma.done [#allocation5], 32
    $region41: #{qst_lstm_encoder_forward.1} parent=1 // pred_fallthru
      _
    // Predicated region
    $region42: #{qst_lstm_encoder_forward.1} parent=1 // pred_check
      _
    $region43: #{qst_lstm_encoder_forward.1} parent=1 // pred_check_branch
      %64 = sbr.rel (0) target = $region45
    $region44: #{qst_lstm_encoder_forward.1} parent=1 // pred_region
      %65 = dma.done [#allocation3], 16
    $region45: #{qst_lstm_encoder_forward.1} parent=1 // pred_fallthru
      _
    // Predicated region
    $region46: #{qst_lstm_encoder_forward.1} parent=1 // pred_check
      _
    $region47: #{qst_lstm_encoder_forward.1} parent=1 // pred_check_branch
      %67 = sbr.rel (0) target = $region49
    $region48: #{qst_lstm_encoder_forward.1} parent=1 // pred_region
      %68 = dma.done [#allocation8], 16
    $region49: #{qst_lstm_encoder_forward.1} parent=1 // pred_fallthru
      _
    %69 = sfence
    %s71 = sld [smem:[#allocation2]]
    %s72 = scalar_lea.vmem %s1, %s71
    %v73 = vld [vmem:[%s72] sm:$0x1]
    %s74 = sld [smem:[#allocation2 + $0x80]]
    %s75 = scalar_lea.vmem %s1, %s74
    %v76 = vld [vmem:[%s75] sm:$0x1]
    %s77 = sld [smem:[#allocation2 + $0x1]]
    %s78 = scalar_lea.vmem %s1, %s77
    %v79 = vld [vmem:[%s78] sm:$0x1]
    %s80 = sld [smem:[#allocation2 + $0x81]]
    %s81 = scalar_lea.vmem %s1, %s80
    %v82 = vld [vmem:[%s81] sm:$0x1]
    %s83 = sld [smem:[#allocation2 + $0x2]]
    %s84 = scalar_lea.vmem %s1, %s83
    %v85 = vld [vmem:[%s84] sm:$0x1]
    %s86 = sld [smem:[#allocation2 + $0x82]]
    %s87 = scalar_lea.vmem %s1, %s86
    %v88 = vld [vmem:[%s87] sm:$0x1]
    %s89 = sld [smem:[#allocation2 + $0x3]]
    %s90 = scalar_lea.vmem %s1, %s89
    %v91 = vld [vmem:[%s90] sm:$0x1]
    %s92 = sld [smem:[#allocation2 + $0x83]]
    %s93 = scalar_lea.vmem %s1, %s92
    %v94 = vld [vmem:[%s93] sm:$0x1]
    %s95 = sld [smem:[#allocation2 + $0x4]]
    %s96 = scalar_lea.vmem %s1, %s95
    %v97 = vld [vmem:[%s96] sm:$0x1]
    %s98 = sld [smem:[#allocation2 + $0x84]]
    %s99 = scalar_lea.vmem %s1, %s98
    %v100 = vld [vmem:[%s99] sm:$0x1]
    %s101 = sld [smem:[#allocation2 + $0x5]]
    %s102 = scalar_lea.vmem %s1, %s101
    %v103 = vld [vmem:[%s102] sm:$0x1]
    %s104 = sld [smem:[#allocation2 + $0x85]]
    %s105 = scalar_lea.vmem %s1, %s104
    %v106 = vld [vmem:[%s105] sm:$0x1]
    %s107 = sld [smem:[#allocation2 + $0x6]]
    %s108 = scalar_lea.vmem %s1, %s107
    %v109 = vld [vmem:[%s108] sm:$0x1]
    %s110 = sld [smem:[#allocation2 + $0x86]]
    %s111 = scalar_lea.vmem %s1, %s110
    %v112 = vld [vmem:[%s111] sm:$0x1]
    %s113 = sld [smem:[#allocation2 + $0x7]]
    %s114 = scalar_lea.vmem %s1, %s113
    %v115 = vld [vmem:[%s114] sm:$0x1]
    %s116 = sld [smem:[#allocation2 + $0x87]]
    %s117 = scalar_lea.vmem %s1, %s116
    %v118 = vld [vmem:[%s117] sm:$0x1]
    %v120 = vlaneseq
    %v121 = vshrl.u32 %v120, 7
    %v122 = vsub.s32 0, %v121
    %v123 = vrot.slane %v76, %v122
    %v126 = vlaneseq
    %v127 = vshrl.u32 %v126, 7
    %v128 = vsub.s32 0, %v127
    %v129 = vrot.slane %v79, %v128
    %v132 = vlaneseq
    %v133 = vshrl.u32 %v132, 7
    %v134 = vsub.s32 0, %v133
    %v135 = vrot.slane %v82, %v134
    %v138 = vlaneseq
    %v139 = vshrl.u32 %v138, 7
    %v140 = vsub.s32 0, %v139
    %v141 = vrot.slane %v85, %v140
    %v144 = vlaneseq
    %v145 = vshrl.u32 %v144, 7
    %v146 = vsub.s32 0, %v145
    %v147 = vrot.slane %v88, %v146
    %v150 = vlaneseq
    %v151 = vshrl.u32 %v150, 7
    %v152 = vsub.s32 0, %v151
    %v153 = vrot.slane %v91, %v152
    %v156 = vlaneseq
    %v157 = vshrl.u32 %v156, 7
    %v158 = vsub.s32 0, %v157
    %v159 = vrot.slane %v94, %v158
    %v162 = vlaneseq
    %v163 = vshrl.u32 %v162, 7
    %v164 = vsub.s32 0, %v163
    %v165 = vrot.slane %v100, %v164
    %v168 = vlaneseq
    %v169 = vshrl.u32 %v168, 7
    %v170 = vsub.s32 0, %v169
    %v171 = vrot.slane %v103, %v170
    %v174 = vlaneseq
    %v175 = vshrl.u32 %v174, 7
    %v176 = vsub.s32 0, %v175
    %v177 = vrot.slane %v106, %v176
    %v180 = vlaneseq
    %v181 = vshrl.u32 %v180, 7
    %v182 = vsub.s32 0, %v181
    %v183 = vrot.slane %v109, %v182
    %v186 = vlaneseq
    %v187 = vshrl.u32 %v186, 7
    %v188 = vsub.s32 0, %v187
    %v189 = vrot.slane %v112, %v188
    %v192 = vlaneseq
    %v193 = vshrl.u32 %v192, 7
    %v194 = vsub.s32 0, %v193
    %v195 = vrot.slane %v115, %v194
    %v198 = vlaneseq
    %v199 = vshrl.u32 %v198, 7
    %v200 = vsub.s32 0, %v199
    %v201 = vrot.slane %v118, %v200
    %vm203 = vcmask 1040384
    %v204 = vsel %vm203, %v73, %v123
    %vm205 = vcmask 1041408
    %v206 = vsel %vm205, %v204, %v129
    %vm207 = vcmask 1042432
    %v208 = vsel %vm207, %v206, %v135
    %vm209 = vcmask 1043456
    %v210 = vsel %vm209, %v208, %v141
    %vm211 = vcmask 1044480
    %v212 = vsel %vm211, %v210, %v147
    %vm213 = vcmask 1045504
    %v214 = vsel %vm213, %v212, %v153
    %vm215 = vcmask 1046528
    %v216 = vsel %vm215, %v214, %v159
    %v217 = vsel %vm203, %v97, %v165
    %v218 = vsel %vm205, %v217, %v171
    %v219 = vsel %vm207, %v218, %v177
    %v220 = vsel %vm209, %v219, %v183
    %v221 = vsel %vm211, %v220, %v189
    %v222 = vsel %vm213, %v221, %v195
    %v223 = vsel %vm215, %v222, %v201
    %v224 = vtanh.pop %v216
    %v225 = vtanh.pop %v223
    %v226 = vld [vmem:[%s4] sm:$0x1]
    %v227 = vpack.c.bf16 %v225, %v224
    %v228 = vld [vmem:[%s2] sm:$0xf]
    %v229 = vld [vmem:[%s2 + $0x4] sm:$0xf]
    %v230 = vld [vmem:[%s2 + $0x8] sm:$0xf]
    %v231 = vld [vmem:[%s2 + $0xc] sm:$0xf]
    %v233 = vlaneseq
    %v234 = vshrl.u32 %v233, 7
    %v235 = vsub.s32 0, %v234
    %v236 = vrot.slane %v226, %v235
    %v242 = vunpack.c.l.b16 %v228
    %v243 = vunpack.c.l.b16 %v229
    %v244 = vunpack.c.l.b16 %v230
    %v245 = vunpack.c.l.b16 %v231
    %v246 = vpack.c.b16 %v243, %v242
    %v247 = vpack.c.b16 %v245, %v244
    %vm250 = vcmask 261120
    %v252 = vsel %vm250, %v227, 0
    %254 = vmatprep.subr.bf16.mxu0 0
    %255 = vmatpush1.bf16.msra.mxu0 %v246
    %256 = vmatprep.subr.bf16.mxu0 0
    %257 = vmatpush1.bf16.msra.mxu0 %v247
    %258 = vmatprep.subr.bf16.mxu0 0
    %259 = vmatpush1.bf16.msra.mxu0 0
    %260 = vmatprep.subr.bf16.mxu0 0
    %261 = vmatpush1.bf16.msra.mxu0 0
    %262 = vmatprep.subr.bf16.mxu0 0
    %263 = vmatpush1.bf16.msra.mxu0 0
    %264 = vmatprep.subr.bf16.mxu0 0
    %265 = vmatpush1.bf16.msra.mxu0 0
    %266 = vmatprep.subr.bf16.mxu0 0
    %267 = vmatpush1.bf16.msra.mxu0 0
    %268 = vmatprep.subr.bf16.mxu0 0
    %269 = vmatpush1.bf16.msra.mxu0 0
    %270 = vmatprep.subr.bf16.mxu0 0
    %271 = vmatpush1.bf16.msra.mxu0 0
    %272 = vmatprep.subr.bf16.mxu0 0
    %273 = vmatpush1.bf16.msra.mxu0 0
    %274 = vmatprep.subr.bf16.mxu0 0
    %275 = vmatpush1.bf16.msra.mxu0 0
    %276 = vmatprep.subr.bf16.mxu0 0
    %277 = vmatpush1.bf16.msra.mxu0 0
    %278 = vmatprep.subr.bf16.mxu0 0
    %279 = vmatpush1.bf16.msra.mxu0 0
    %280 = vmatprep.subr.bf16.mxu0 0
    %281 = vmatpush1.bf16.msra.mxu0 0
    %282 = vmatprep.subr.bf16.mxu0 0
    %283 = vmatpush1.bf16.msra.mxu0 0
    %284 = vmatprep.subr.bf16.mxu0 0
    %285 = vmatpush1.bf16.msra.mxu0 0
    %286 = vmatprep.mubr.bf16.mxu0 0
    %287 = vmatmul.mubr.bf16.gmra.mrb[0].mxu0 %v252
    %v288 = vpop.f32.mrb[0].mxu0
    %v289 = vadd.f32 %v236, %v288
    %v290 = vpop.f32.mrb[0].mxu0
    %v291 = vpop.f32.mrb[0].mxu0
    %v292 = vadd.f32 %v236, %v291
    %v293 = vpop.f32.mrb[0].mxu0
    %294 = vdwg.mxu0
    %v295 = vld [vmem:[%s3] sm:$0xff]
    %v296 = vld [vmem:[%s3 + $0x8] sm:$0xff]
    %v297 = vld [vmem:[%s3 + $0x10] sm:$0xff]
    %v298 = vld [vmem:[%s3 + $0x18] sm:$0xff]
    %v299 = vld [vmem:[#allocation6] sm:$0x1]
    %v300 = vadd.f32 %v289, 0.0
    %v301 = vxor.u32 %v300, 2147483648
    %v302 = vmul.f32 %v301, 1.442695
    %v303 = vpow.pop %v302
    %v304 = vadd.f32 %v303, 1.0
    %v305 = vrcp.pop %v304
    %v306 = vmul.f32 1.0, %v305
    %v307 = vtanh.pop %v300
    %v308 = vmul.f32 %v306, 0.0
    %310 = vrot.lane.b32.xlu0 %v307, 64
    %v311 = vpop.permute.xlu0 %310
    %v313 = vmul.f32 %v306, %v311
    %315 = vrot.lane.b32.xlu0 %v313, 32
    %v316 = vpop.permute.xlu0 %315
    %v318 = vadd.f32 %v308, %v316
    %v319 = vtanh.pop %v318
    %321 = vrot.lane.b32.xlu0 %v319, 64
    %v322 = vpop.permute.xlu0 %321
    %v324 = vmul.f32 %v306, %v322
    %v325 = vpack.c.bf16 %v324, %v324
    %327 = vrot.lane.b32.xlu0 %v325, 32
    %v328 = vpop.permute.xlu0 %327
    %v333 = vunpack.c.l.b16 %v295
    %v334 = vunpack.c.h.b16 %v295
    %v335 = vunpack.c.l.b16 %v296
    %v336 = vunpack.c.h.b16 %v296
    %v337 = vunpack.c.l.b16 %v297
    %v338 = vunpack.c.h.b16 %v297
    %v339 = vunpack.c.l.b16 %v298
    %v340 = vunpack.c.h.b16 %v298
    %v341 = vpack.c.b16 %v335, %v333
    %v342 = vpack.c.b16 %v336, %v334
    %v343 = vpack.c.b16 %v339, %v337
    %v344 = vpack.c.b16 %v340, %v338
    %v350 = vsel %vm250, %v328, 0
    %352 = vmatprep.subr.bf16.mxu0 %v342
    %353 = vmatpush1.bf16.msra.mxu0 %v341
    %354 = vmatprep.subr.bf16.mxu0 %v344
    %355 = vmatpush1.bf16.msra.mxu0 %v343
    %356 = vmatprep.subr.bf16.mxu0 0
    %357 = vmatpush1.bf16.msra.mxu0 0
    %358 = vmatprep.subr.bf16.mxu0 0
    %359 = vmatpush1.bf16.msra.mxu0 0
    %360 = vmatprep.subr.bf16.mxu0 0
    %361 = vmatpush1.bf16.msra.mxu0 0
    %362 = vmatprep.subr.bf16.mxu0 0
    %363 = vmatpush1.bf16.msra.mxu0 0
    %364 = vmatprep.subr.bf16.mxu0 0
    %365 = vmatpush1.bf16.msra.mxu0 0
    %366 = vmatprep.subr.bf16.mxu0 0
    %367 = vmatpush1.bf16.msra.mxu0 0
    %368 = vmatprep.subr.bf16.mxu0 0
    %369 = vmatpush1.bf16.msra.mxu0 0
    %370 = vmatprep.subr.bf16.mxu0 0
    %371 = vmatpush1.bf16.msra.mxu0 0
    %372 = vmatprep.subr.bf16.mxu0 0
    %373 = vmatpush1.bf16.msra.mxu0 0
    %374 = vmatprep.subr.bf16.mxu0 0
    %375 = vmatpush1.bf16.msra.mxu0 0
    %376 = vmatprep.subr.bf16.mxu0 0
    %377 = vmatpush1.bf16.msra.mxu0 0
    %378 = vmatprep.subr.bf16.mxu0 0
    %379 = vmatpush1.bf16.msra.mxu0 0
    %380 = vmatprep.subr.bf16.mxu0 0
    %381 = vmatpush1.bf16.msra.mxu0 0
    %382 = vmatprep.subr.bf16.mxu0 0
    %383 = vmatpush1.bf16.msra.mxu0 0
    %384 = vmatprep.mubr.bf16.mxu0 0
    %385 = vmatmul.mubr.bf16.gmra.mrb[0].mxu0 %v350
    %v386 = vpop.f32.mrb[0].mxu0
    %v387 = vadd.f32 0.0, %v386
    %v388 = vpop.f32.mrb[0].mxu0
    %v389 = vadd.f32 0.0, %v388
    %v390 = vpop.f32.mrb[0].mxu0
    %v391 = vpop.f32.mrb[0].mxu0
    %392 = vdwg.mxu0
    %v394 = vlaneseq
    %v395 = vshrl.u32 %v394, 7
    %v396 = vsub.s32 0, %v395
    %v397 = vrot.slane %v299, %v396
    %v399 = vadd.f32 %v389, %v397
    %v401 = vrot.slane %v387, 6
    %v403 = vadd.f32 %v289, %v401
    %v404 = vxor.u32 %v403, 2147483648
    %v405 = vmul.f32 %v404, 1.442695
    %v406 = vpow.pop %v405
    %v407 = vadd.f32 %v406, 1.0
    %v408 = vrcp.pop %v407
    %v409 = vmul.f32 1.0, %v408
    %v410 = vtanh.pop %v403
    %v412 = vrot.slane %v318, 6
    %v414 = vmul.f32 %v409, %v412
    %416 = vrot.lane.b32.xlu0 %v410, 64
    %v417 = vpop.permute.xlu0 %416
    %v419 = vmul.f32 %v409, %v417
    %421 = vrot.lane.b32.xlu0 %v419, 32
    %v422 = vpop.permute.xlu0 %421
    %v424 = vadd.f32 %v414, %v422
    %v425 = vtanh.pop %v424
    %427 = vrot.lane.b32.xlu0 %v425, 64
    %v428 = vpop.permute.xlu0 %427
    %v430 = vmul.f32 %v409, %v428
    %v431 = vpack.c.bf16 %v430, %v430
    %v433 = vrot.slane %v431, 1
    %434 = vrot.lane.b32.xlu0 %v433, 32
    %v435 = vpop.permute.xlu0 %434
    %v437 = vsel %vm250, %v435, 0
    %439 = vmatprep.subr.bf16.mxu0 %v342
    %440 = vmatpush1.bf16.msra.mxu0 %v341
    %441 = vmatprep.subr.bf16.mxu0 %v344
    %442 = vmatpush1.bf16.msra.mxu0 %v343
    %443 = vmatprep.subr.bf16.mxu0 0
    %444 = vmatpush1.bf16.msra.mxu0 0
    %445 = vmatprep.subr.bf16.mxu0 0
    %446 = vmatpush1.bf16.msra.mxu0 0
    %447 = vmatprep.subr.bf16.mxu0 0
    %448 = vmatpush1.bf16.msra.mxu0 0
    %449 = vmatprep.subr.bf16.mxu0 0
    %450 = vmatpush1.bf16.msra.mxu0 0
    %451 = vmatprep.subr.bf16.mxu0 0
    %452 = vmatpush1.bf16.msra.mxu0 0
    %453 = vmatprep.subr.bf16.mxu0 0
    %454 = vmatpush1.bf16.msra.mxu0 0
    %455 = vmatprep.subr.bf16.mxu0 0
    %456 = vmatpush1.bf16.msra.mxu0 0
    %457 = vmatprep.subr.bf16.mxu0 0
    %458 = vmatpush1.bf16.msra.mxu0 0
    %459 = vmatprep.subr.bf16.mxu0 0
    %460 = vmatpush1.bf16.msra.mxu0 0
    %461 = vmatprep.subr.bf16.mxu0 0
    %462 = vmatpush1.bf16.msra.mxu0 0
    %463 = vmatprep.subr.bf16.mxu0 0
    %464 = vmatpush1.bf16.msra.mxu0 0
    %465 = vmatprep.subr.bf16.mxu0 0
    %466 = vmatpush1.bf16.msra.mxu0 0
    %467 = vmatprep.subr.bf16.mxu0 0
    %468 = vmatpush1.bf16.msra.mxu0 0
    %469 = vmatprep.subr.bf16.mxu0 0
    %470 = vmatpush1.bf16.msra.mxu0 0
    %471 = vmatprep.mubr.bf16.mxu0 0
    %472 = vmatmul.mubr.bf16.gmra.mrb[0].mxu0 %v437
    %v473 = vpop.f32.mrb[0].mxu0
    %v474 = vadd.f32 0.0, %v473
    %v475 = vpop.f32.mrb[0].mxu0
    %v476 = vadd.f32 0.0, %v475
    %v477 = vpop.f32.mrb[0].mxu0
    %v478 = vpop.f32.mrb[0].mxu0
    %479 = vdwg.mxu0
    %v480 = vadd.f32 %v476, %v397
    %v482 = vrot.slane %v474, 4
    %v484 = vadd.f32 %v289, %v482
    %v485 = vxor.u32 %v484, 2147483648
    %v486 = vmul.f32 %v485, 1.442695
    %v487 = vpow.pop %v486
    %v488 = vadd.f32 %v487, 1.0
    %v489 = vrcp.pop %v488
    %v490 = vmul.f32 1.0, %v489
    %v491 = vtanh.pop %v484
    %v493 = vrot.slane %v424, 6
    %v495 = vmul.f32 %v490, %v493
    %497 = vrot.lane.b32.xlu0 %v491, 64
    %v498 = vpop.permute.xlu0 %497
    %v500 = vmul.f32 %v490, %v498
    %502 = vrot.lane.b32.xlu0 %v500, 32
    %v503 = vpop.permute.xlu0 %502
    %v505 = vadd.f32 %v495, %v503
    %v506 = vtanh.pop %v505
    %508 = vrot.lane.b32.xlu0 %v506, 64
    %v509 = vpop.permute.xlu0 %508
    %v511 = vmul.f32 %v490, %v509
    %v512 = vpack.c.bf16 %v511, %v511
    %v514 = vrot.slane %v512, 2
    %515 = vrot.lane.b32.xlu0 %v514, 32
    %v516 = vpop.permute.xlu0 %515
    %v518 = vsel %vm250, %v516, 0
    %520 = vmatprep.subr.bf16.mxu0 %v342
    %521 = vmatpush1.bf16.msra.mxu0 %v341
    %522 = vmatprep.subr.bf16.mxu0 %v344
    %523 = vmatpush1.bf16.msra.mxu0 %v343
    %524 = vmatprep.subr.bf16.mxu0 0
    %525 = vmatpush1.bf16.msra.mxu0 0
    %526 = vmatprep.subr.bf16.mxu0 0
    %527 = vmatpush1.bf16.msra.mxu0 0
    %528 = vmatprep.subr.bf16.mxu0 0
    %529 = vmatpush1.bf16.msra.mxu0 0
    %530 = vmatprep.subr.bf16.mxu0 0
    %531 = vmatpush1.bf16.msra.mxu0 0
    %532 = vmatprep.subr.bf16.mxu0 0
    %533 = vmatpush1.bf16.msra.mxu0 0
    %534 = vmatprep.subr.bf16.mxu0 0
    %535 = vmatpush1.bf16.msra.mxu0 0
    %536 = vmatprep.subr.bf16.mxu0 0
    %537 = vmatpush1.bf16.msra.mxu0 0
    %538 = vmatprep.subr.bf16.mxu0 0
    %539 = vmatpush1.bf16.msra.mxu0 0
    %540 = vmatprep.subr.bf16.mxu0 0
    %541 = vmatpush1.bf16.msra.mxu0 0
    %542 = vmatprep.subr.bf16.mxu0 0
    %543 = vmatpush1.bf16.msra.mxu0 0
    %544 = vmatprep.subr.bf16.mxu0 0
    %545 = vmatpush1.bf16.msra.mxu0 0
    %546 = vmatprep.subr.bf16.mxu0 0
    %547 = vmatpush1.bf16.msra.mxu0 0
    %548 = vmatprep.subr.bf16.mxu0 0
    %549 = vmatpush1.bf16.msra.mxu0 0
    %550 = vmatprep.subr.bf16.mxu0 0
    %551 = vmatpush1.bf16.msra.mxu0 0
    %552 = vmatprep.mubr.bf16.mxu0 0
    %553 = vmatmul.mubr.bf16.gmra.mrb[0].mxu0 %v518
    %v554 = vpop.f32.mrb[0].mxu0
    %v555 = vadd.f32 0.0, %v554
    %v556 = vpop.f32.mrb[0].mxu0
    %v557 = vadd.f32 0.0, %v556
    %v558 = vpop.f32.mrb[0].mxu0
    %v559 = vpop.f32.mrb[0].mxu0
    %560 = vdwg.mxu0
    %v561 = vadd.f32 %v557, %v397
    %v563 = vrot.slane %v555, 2
    %v565 = vadd.f32 %v289, %v563
    %v566 = vxor.u32 %v565, 2147483648
    %v567 = vmul.f32 %v566, 1.442695
    %v568 = vpow.pop %v567
    %v569 = vadd.f32 %v568, 1.0
    %v570 = vrcp.pop %v569
    %v571 = vmul.f32 1.0, %v570
    %v572 = vtanh.pop %v565
    %v574 = vrot.slane %v505, 6
    %v576 = vmul.f32 %v571, %v574
    %578 = vrot.lane.b32.xlu0 %v572, 64
    %v579 = vpop.permute.xlu0 %578
    %v581 = vmul.f32 %v571, %v579
    %583 = vrot.lane.b32.xlu0 %v581, 32
    %v584 = vpop.permute.xlu0 %583
    %v586 = vadd.f32 %v576, %v584
    %v587 = vtanh.pop %v586
    %589 = vrot.lane.b32.xlu0 %v587, 64
    %v590 = vpop.permute.xlu0 %589
    %v592 = vmul.f32 %v571, %v590
    %v593 = vpack.c.bf16 %v592, %v592
    %v595 = vrot.slane %v593, 3
    %596 = vrot.lane.b32.xlu0 %v595, 32
    %v597 = vpop.permute.xlu0 %596
    %v599 = vsel %vm250, %v597, 0
    %601 = vmatprep.subr.bf16.mxu0 %v342
    %602 = vmatpush1.bf16.msra.mxu0 %v341
    %603 = vmatprep.subr.bf16.mxu0 %v344
    %604 = vmatpush1.bf16.msra.mxu0 %v343
    %605 = vmatprep.subr.bf16.mxu0 0
    %606 = vmatpush1.bf16.msra.mxu0 0
    %607 = vmatprep.subr.bf16.mxu0 0
    %608 = vmatpush1.bf16.msra.mxu0 0
    %609 = vmatprep.subr.bf16.mxu0 0
    %610 = vmatpush1.bf16.msra.mxu0 0
    %611 = vmatprep.subr.bf16.mxu0 0
    %612 = vmatpush1.bf16.msra.mxu0 0
    %613 = vmatprep.subr.bf16.mxu0 0
    %614 = vmatpush1.bf16.msra.mxu0 0
    %615 = vmatprep.subr.bf16.mxu0 0
    %616 = vmatpush1.bf16.msra.mxu0 0
    %617 = vmatprep.subr.bf16.mxu0 0
    %618 = vmatpush1.bf16.msra.mxu0 0
    %619 = vmatprep.subr.bf16.mxu0 0
    %620 = vmatpush1.bf16.msra.mxu0 0
    %621 = vmatprep.subr.bf16.mxu0 0
    %622 = vmatpush1.bf16.msra.mxu0 0
    %623 = vmatprep.subr.bf16.mxu0 0
    %624 = vmatpush1.bf16.msra.mxu0 0
    %625 = vmatprep.subr.bf16.mxu0 0
    %626 = vmatpush1.bf16.msra.mxu0 0
    %627 = vmatprep.subr.bf16.mxu0 0
    %628 = vmatpush1.bf16.msra.mxu0 0
    %629 = vmatprep.subr.bf16.mxu0 0
    %630 = vmatpush1.bf16.msra.mxu0 0
    %631 = vmatprep.subr.bf16.mxu0 0
    %632 = vmatpush1.bf16.msra.mxu0 0
    %633 = vmatprep.mubr.bf16.mxu0 0
    %634 = vmatmul.mubr.bf16.gmra.mrb[0].mxu0 %v599
    %v635 = vpop.f32.mrb[0].mxu0
    %v636 = vadd.f32 0.0, %v635
    %v637 = vpop.f32.mrb[0].mxu0
    %v638 = vadd.f32 0.0, %v637
    %v639 = vpop.f32.mrb[0].mxu0
    %v640 = vpop.f32.mrb[0].mxu0
    %641 = vdwg.mxu0
    %v642 = vadd.f32 %v638, %v397
    %v643 = vadd.f32 %v292, %v636
    %v644 = vxor.u32 %v643, 2147483648
    %v645 = vmul.f32 %v644, 1.442695
    %v646 = vpow.pop %v645
    %v647 = vadd.f32 %v646, 1.0
    %v648 = vrcp.pop %v647
    %v649 = vmul.f32 1.0, %v648
    %v650 = vtanh.pop %v643
    %v652 = vrot.slane %v586, 6
    %v654 = vmul.f32 %v649, %v652
    %656 = vrot.lane.b32.xlu0 %v650, 64
    %v657 = vpop.permute.xlu0 %656
    %v659 = vmul.f32 %v649, %v657
    %661 = vrot.lane.b32.xlu0 %v659, 32
    %v662 = vpop.permute.xlu0 %661
    %v664 = vadd.f32 %v654, %v662
    %v665 = vtanh.pop %v664
    %667 = vrot.lane.b32.xlu0 %v665, 64
    %v668 = vpop.permute.xlu0 %667
    %v670 = vmul.f32 %v649, %v668
    %v671 = vpack.c.bf16 %v670, %v670
    %673 = vrot.lane.b32.xlu0 %v671, 32
    %v674 = vpop.permute.xlu0 %673
    %v676 = vsel %vm250, %v674, 0
    %678 = vmatprep.subr.bf16.mxu0 %v342
    %679 = vmatpush1.bf16.msra.mxu0 %v341
    %680 = vmatprep.subr.bf16.mxu0 %v344
    %681 = vmatpush1.bf16.msra.mxu0 %v343
    %682 = vmatprep.subr.bf16.mxu0 0
    %683 = vmatpush1.bf16.msra.mxu0 0
    %684 = vmatprep.subr.bf16.mxu0 0
    %685 = vmatpush1.bf16.msra.mxu0 0
    %686 = vmatprep.subr.bf16.mxu0 0
    %687 = vmatpush1.bf16.msra.mxu0 0
    %688 = vmatprep.subr.bf16.mxu0 0
    %689 = vmatpush1.bf16.msra.mxu0 0
    %690 = vmatprep.subr.bf16.mxu0 0
    %691 = vmatpush1.bf16.msra.mxu0 0
    %692 = vmatprep.subr.bf16.mxu0 0
    %693 = vmatpush1.bf16.msra.mxu0 0
    %694 = vmatprep.subr.bf16.mxu0 0
    %695 = vmatpush1.bf16.msra.mxu0 0
    %696 = vmatprep.subr.bf16.mxu0 0
    %697 = vmatpush1.bf16.msra.mxu0 0
    %698 = vmatprep.subr.bf16.mxu0 0
    %699 = vmatpush1.bf16.msra.mxu0 0
    %700 = vmatprep.subr.bf16.mxu0 0
    %701 = vmatpush1.bf16.msra.mxu0 0
    %702 = vmatprep.subr.bf16.mxu0 0
    %703 = vmatpush1.bf16.msra.mxu0 0
    %704 = vmatprep.subr.bf16.mxu0 0
    %705 = vmatpush1.bf16.msra.mxu0 0
    %706 = vmatprep.subr.bf16.mxu0 0
    %707 = vmatpush1.bf16.msra.mxu0 0
    %708 = vmatprep.subr.bf16.mxu0 0
    %709 = vmatpush1.bf16.msra.mxu0 0
    %710 = vmatprep.mubr.bf16.mxu0 0
    %711 = vmatmul.mubr.bf16.gmra.mrb[0].mxu0 %v676
    %v712 = vpop.f32.mrb[0].mxu0
    %v713 = vadd.f32 0.0, %v712
    %v714 = vpop.f32.mrb[0].mxu0
    %v715 = vadd.f32 0.0, %v714
    %v716 = vpop.f32.mrb[0].mxu0
    %v717 = vpop.f32.mrb[0].mxu0
    %718 = vdwg.mxu0
    %v719 = vadd.f32 %v715, %v397
    %v721 = vrot.slane %v713, 6
    %v723 = vadd.f32 %v292, %v721
    %v724 = vxor.u32 %v723, 2147483648
    %v725 = vmul.f32 %v724, 1.442695
    %v726 = vpow.pop %v725
    %v727 = vadd.f32 %v726, 1.0
    %v728 = vrcp.pop %v727
    %v729 = vmul.f32 1.0, %v728
    %v730 = vtanh.pop %v723
    %v732 = vrot.slane %v664, 6
    %v734 = vmul.f32 %v729, %v732
    %736 = vrot.lane.b32.xlu0 %v730, 64
    %v737 = vpop.permute.xlu0 %736
    %v739 = vmul.f32 %v729, %v737
    %741 = vrot.lane.b32.xlu0 %v739, 32
    %v742 = vpop.permute.xlu0 %741
    %v744 = vadd.f32 %v734, %v742
    %v745 = vtanh.pop %v744
    %747 = vrot.lane.b32.xlu0 %v745, 64
    %v748 = vpop.permute.xlu0 %747
    %v750 = vmul.f32 %v729, %v748
    %v751 = vpack.c.bf16 %v750, %v750
    %v753 = vrot.slane %v751, 1
    %754 = vrot.lane.b32.xlu0 %v753, 32
    %v755 = vpop.permute.xlu0 %754
    %v757 = vsel %vm250, %v755, 0
    %759 = vmatprep.subr.bf16.mxu0 %v342
    %760 = vmatpush1.bf16.msra.mxu0 %v341
    %761 = vmatprep.subr.bf16.mxu0 %v344
    %762 = vmatpush1.bf16.msra.mxu0 %v343
    %763 = vmatprep.subr.bf16.mxu0 0
    %764 = vmatpush1.bf16.msra.mxu0 0
    %765 = vmatprep.subr.bf16.mxu0 0
    %766 = vmatpush1.bf16.msra.mxu0 0
    %767 = vmatprep.subr.bf16.mxu0 0
    %768 = vmatpush1.bf16.msra.mxu0 0
    %769 = vmatprep.subr.bf16.mxu0 0
    %770 = vmatpush1.bf16.msra.mxu0 0
    %771 = vmatprep.subr.bf16.mxu0 0
    %772 = vmatpush1.bf16.msra.mxu0 0
    %773 = vmatprep.subr.bf16.mxu0 0
    %774 = vmatpush1.bf16.msra.mxu0 0
    %775 = vmatprep.subr.bf16.mxu0 0
    %776 = vmatpush1.bf16.msra.mxu0 0
    %777 = vmatprep.subr.bf16.mxu0 0
    %778 = vmatpush1.bf16.msra.mxu0 0
    %779 = vmatprep.subr.bf16.mxu0 0
    %780 = vmatpush1.bf16.msra.mxu0 0
    %781 = vmatprep.subr.bf16.mxu0 0
    %782 = vmatpush1.bf16.msra.mxu0 0
    %783 = vmatprep.subr.bf16.mxu0 0
    %784 = vmatpush1.bf16.msra.mxu0 0
    %785 = vmatprep.subr.bf16.mxu0 0
    %786 = vmatpush1.bf16.msra.mxu0 0
    %787 = vmatprep.subr.bf16.mxu0 0
    %788 = vmatpush1.bf16.msra.mxu0 0
    %789 = vmatprep.subr.bf16.mxu0 0
    %790 = vmatpush1.bf16.msra.mxu0 0
    %791 = vmatprep.mubr.bf16.mxu0 0
    %792 = vmatmul.mubr.bf16.gmra.mrb[0].mxu0 %v757
    %v793 = vpop.f32.mrb[0].mxu0
    %v794 = vadd.f32 0.0, %v793
    %v795 = vpop.f32.mrb[0].mxu0
    %v796 = vadd.f32 0.0, %v795
    %v797 = vpop.f32.mrb[0].mxu0
    %v798 = vpop.f32.mrb[0].mxu0
    %799 = vdwg.mxu0
    %v800 = vadd.f32 %v796, %v397
    %v802 = vrot.slane %v794, 4
    %v804 = vadd.f32 %v292, %v802
    %v805 = vxor.u32 %v804, 2147483648
    %v806 = vmul.f32 %v805, 1.442695
    %v807 = vpow.pop %v806
    %v808 = vadd.f32 %v807, 1.0
    %v809 = vrcp.pop %v808
    %v810 = vmul.f32 1.0, %v809
    %v811 = vtanh.pop %v804
    %v813 = vrot.slane %v744, 6
    %v815 = vmul.f32 %v810, %v813
    %817 = vrot.lane.b32.xlu0 %v811, 64
    %v818 = vpop.permute.xlu0 %817
    %v820 = vmul.f32 %v810, %v818
    %822 = vrot.lane.b32.xlu0 %v820, 32
    %v823 = vpop.permute.xlu0 %822
    %v825 = vadd.f32 %v815, %v823
    %v826 = vtanh.pop %v825
    %828 = vrot.lane.b32.xlu0 %v826, 64
    %v829 = vpop.permute.xlu0 %828
    %v831 = vmul.f32 %v810, %v829
    %v832 = vpack.c.bf16 %v831, %v831
    %v834 = vrot.slane %v832, 2
    %835 = vrot.lane.b32.xlu0 %v834, 32
    %v836 = vpop.permute.xlu0 %835
    %v838 = vsel %vm250, %v836, 0
    %840 = vmatprep.subr.bf16.mxu0 %v342
    %841 = vmatpush1.bf16.msra.mxu0 %v341
    %842 = vmatprep.subr.bf16.mxu0 %v344
    %843 = vmatpush1.bf16.msra.mxu0 %v343
    %844 = vmatprep.subr.bf16.mxu0 0
    %845 = vmatpush1.bf16.msra.mxu0 0
    %846 = vmatprep.subr.bf16.mxu0 0
    %847 = vmatpush1.bf16.msra.mxu0 0
    %848 = vmatprep.subr.bf16.mxu0 0
    %849 = vmatpush1.bf16.msra.mxu0 0
    %850 = vmatprep.subr.bf16.mxu0 0
    %851 = vmatpush1.bf16.msra.mxu0 0
    %852 = vmatprep.subr.bf16.mxu0 0
    %853 = vmatpush1.bf16.msra.mxu0 0
    %854 = vmatprep.subr.bf16.mxu0 0
    %855 = vmatpush1.bf16.msra.mxu0 0
    %856 = vmatprep.subr.bf16.mxu0 0
    %857 = vmatpush1.bf16.msra.mxu0 0
    %858 = vmatprep.subr.bf16.mxu0 0
    %859 = vmatpush1.bf16.msra.mxu0 0
    %860 = vmatprep.subr.bf16.mxu0 0
    %861 = vmatpush1.bf16.msra.mxu0 0
    %862 = vmatprep.subr.bf16.mxu0 0
    %863 = vmatpush1.bf16.msra.mxu0 0
    %864 = vmatprep.subr.bf16.mxu0 0
    %865 = vmatpush1.bf16.msra.mxu0 0
    %866 = vmatprep.subr.bf16.mxu0 0
    %867 = vmatpush1.bf16.msra.mxu0 0
    %868 = vmatprep.subr.bf16.mxu0 0
    %869 = vmatpush1.bf16.msra.mxu0 0
    %870 = vmatprep.subr.bf16.mxu0 0
    %871 = vmatpush1.bf16.msra.mxu0 0
    %872 = vmatprep.mubr.bf16.mxu0 0
    %873 = vmatmul.mubr.bf16.gmra.mrb[0].mxu0 %v838
    %v874 = vpop.f32.mrb[0].mxu0
    %v875 = vadd.f32 0.0, %v874
    %v876 = vpop.f32.mrb[0].mxu0
    %v877 = vadd.f32 0.0, %v876
    %v878 = vpop.f32.mrb[0].mxu0
    %v879 = vpop.f32.mrb[0].mxu0
    %880 = vdwg.mxu0
    %v881 = vadd.f32 %v877, %v397
    %v883 = vrot.slane %v875, 2
    %v885 = vadd.f32 %v292, %v883
    %v886 = vxor.u32 %v885, 2147483648
    %v887 = vmul.f32 %v886, 1.442695
    %v888 = vpow.pop %v887
    %v889 = vadd.f32 %v888, 1.0
    %v890 = vrcp.pop %v889
    %v891 = vmul.f32 1.0, %v890
    %v892 = vtanh.pop %v885
    %v894 = vrot.slane %v825, 6
    %v896 = vmul.f32 %v891, %v894
    %898 = vrot.lane.b32.xlu0 %v892, 64
    %v899 = vpop.permute.xlu0 %898
    %v901 = vmul.f32 %v891, %v899
    %903 = vrot.lane.b32.xlu0 %v901, 32
    %v904 = vpop.permute.xlu0 %903
    %v906 = vadd.f32 %v896, %v904
    %v907 = vtanh.pop %v906
    %909 = vrot.lane.b32.xlu0 %v907, 64
    %v910 = vpop.permute.xlu0 %909
    %v912 = vmul.f32 %v891, %v910
    %v913 = vpack.c.bf16 %v912, %v912
    %v915 = vrot.slane %v913, 3
    %916 = vrot.lane.b32.xlu0 %v915, 32
    %v917 = vpop.permute.xlu0 %916
    %v919 = vsel %vm250, %v917, 0
    %921 = vmatprep.subr.bf16.mxu0 %v342
    %922 = vmatpush1.bf16.msra.mxu0 %v341
    %923 = vmatprep.subr.bf16.mxu0 %v344
    %924 = vmatpush1.bf16.msra.mxu0 %v343
    %925 = vmatprep.subr.bf16.mxu0 0
    %926 = vmatpush1.bf16.msra.mxu0 0
    %927 = vmatprep.subr.bf16.mxu0 0
    %928 = vmatpush1.bf16.msra.mxu0 0
    %929 = vmatprep.subr.bf16.mxu0 0
    %930 = vmatpush1.bf16.msra.mxu0 0
    %931 = vmatprep.subr.bf16.mxu0 0
    %932 = vmatpush1.bf16.msra.mxu0 0
    %933 = vmatprep.subr.bf16.mxu0 0
    %934 = vmatpush1.bf16.msra.mxu0 0
    %935 = vmatprep.subr.bf16.mxu0 0
    %936 = vmatpush1.bf16.msra.mxu0 0
    %937 = vmatprep.subr.bf16.mxu0 0
    %938 = vmatpush1.bf16.msra.mxu0 0
    %939 = vmatprep.subr.bf16.mxu0 0
    %940 = vmatpush1.bf16.msra.mxu0 0
    %941 = vmatprep.subr.bf16.mxu0 0
    %942 = vmatpush1.bf16.msra.mxu0 0
    %943 = vmatprep.subr.bf16.mxu0 0
    %944 = vmatpush1.bf16.msra.mxu0 0
    %945 = vmatprep.subr.bf16.mxu0 0
    %946 = vmatpush1.bf16.msra.mxu0 0
    %947 = vmatprep.subr.bf16.mxu0 0
    %948 = vmatpush1.bf16.msra.mxu0 0
    %949 = vmatprep.subr.bf16.mxu0 0
    %950 = vmatpush1.bf16.msra.mxu0 0
    %951 = vmatprep.subr.bf16.mxu0 0
    %952 = vmatpush1.bf16.msra.mxu0 0
    %953 = vmatprep.mubr.bf16.mxu0 0
    %954 = vmatmul.mubr.bf16.gmra.mrb[0].mxu0 %v919
    %v955 = vpop.f32.mrb[0].mxu0
    %v956 = vpop.f32.mrb[0].mxu0
    %v957 = vadd.f32 0.0, %v956
    %v958 = vpop.f32.mrb[0].mxu0
    %v959 = vpop.f32.mrb[0].mxu0
    %960 = vdwg.mxu0
    %v961 = vadd.f32 %v957, %v397
    %v962 = vld [vmem:[%s5] sm:$0xf]
    %v963 = vld [vmem:[%s5 + $0x4] sm:$0xf]
    %v964 = vld [vmem:[%s5 + $0x8] sm:$0xf]
    %v965 = vld [vmem:[%s5 + $0xc] sm:$0xf]
    %v966 = vadd.f32 %v399, 0.0
    %v967 = vxor.u32 %v966, 2147483648
    %v968 = vmul.f32 %v967, 1.442695
    %v969 = vpow.pop %v968
    %v970 = vadd.f32 %v969, 1.0
    %v971 = vrcp.pop %v970
    %v972 = vmul.f32 1.0, %v971
    %v973 = vtanh.pop %v966
    %v974 = vmul.f32 %v972, 0.0
    %976 = vrot.lane.b32.xlu0 %v973, 64
    %v977 = vpop.permute.xlu0 %976
    %v979 = vmul.f32 %v972, %v977
    %981 = vrot.lane.b32.xlu0 %v979, 32
    %v982 = vpop.permute.xlu0 %981
    %v984 = vadd.f32 %v974, %v982
    %v985 = vtanh.pop %v984
    %987 = vrot.lane.b32.xlu0 %v985, 64
    %v988 = vpop.permute.xlu0 %987
    %v990 = vmul.f32 %v972, %v988
    %v991 = vpack.c.bf16 %v990, %v990
    %993 = vrot.lane.b32.xlu0 %v991, 32
    %v994 = vpop.permute.xlu0 %993
    %v999 = vunpack.c.l.b16 %v962
    %v1000 = vunpack.c.l.b16 %v963
    %v1001 = vunpack.c.l.b16 %v964
    %v1002 = vunpack.c.l.b16 %v965
    %v1003 = vpack.c.b16 %v1000, %v999
    %v1004 = vpack.c.b16 %v1002, %v1001
    %v1008 = vsel %vm250, %v994, 0
    %1010 = vmatprep.subr.bf16.mxu0 0
    %1011 = vmatpush1.bf16.msra.mxu0 %v1003
    %1012 = vmatprep.subr.bf16.mxu0 0
    %1013 = vmatpush1.bf16.msra.mxu0 %v1004
    %1014 = vmatprep.subr.bf16.mxu0 0
    %1015 = vmatpush1.bf16.msra.mxu0 0
    %1016 = vmatprep.subr.bf16.mxu0 0
    %1017 = vmatpush1.bf16.msra.mxu0 0
    %1018 = vmatprep.subr.bf16.mxu0 0
    %1019 = vmatpush1.bf16.msra.mxu0 0
    %1020 = vmatprep.subr.bf16.mxu0 0
    %1021 = vmatpush1.bf16.msra.mxu0 0
    %1022 = vmatprep.subr.bf16.mxu0 0
    %1023 = vmatpush1.bf16.msra.mxu0 0
    %1024 = vmatprep.subr.bf16.mxu0 0
    %1025 = vmatpush1.bf16.msra.mxu0 0
    %1026 = vmatprep.subr.bf16.mxu0 0
    %1027 = vmatpush1.bf16.msra.mxu0 0
    %1028 = vmatprep.subr.bf16.mxu0 0
    %1029 = vmatpush1.bf16.msra.mxu0 0
    %1030 = vmatprep.subr.bf16.mxu0 0
    %1031 = vmatpush1.bf16.msra.mxu0 0
    %1032 = vmatprep.subr.bf16.mxu0 0
    %1033 = vmatpush1.bf16.msra.mxu0 0
    %1034 = vmatprep.subr.bf16.mxu0 0
    %1035 = vmatpush1.bf16.msra.mxu0 0
    %1036 = vmatprep.subr.bf16.mxu0 0
    %1037 = vmatpush1.bf16.msra.mxu0 0
    %1038 = vmatprep.subr.bf16.mxu0 0
    %1039 = vmatpush1.bf16.msra.mxu0 0
    %1040 = vmatprep.subr.bf16.mxu0 0
    %1041 = vmatpush1.bf16.msra.mxu0 0
    %1042 = vmatprep.mubr.bf16.mxu0 0
    %1043 = vmatmul.mubr.bf16.gmra.mrb[0].mxu0 %v1008
    %v1044 = vpop.f32.mrb[0].mxu0
    %v1045 = vadd.f32 0.0, %v1044
    %v1046 = vpop.f32.mrb[0].mxu0
    %v1047 = vpop.f32.mrb[0].mxu0
    %v1048 = vpop.f32.mrb[0].mxu0
    %1049 = vdwg.mxu0
    %v1050 = vadd.f32 %v480, %v1045
    %v1051 = vxor.u32 %v1050, 2147483648
    %v1052 = vmul.f32 %v1051, 1.442695
    %v1053 = vpow.pop %v1052
    %v1054 = vadd.f32 %v1053, 1.0
    %v1055 = vrcp.pop %v1054
    %v1056 = vmul.f32 1.0, %v1055
    %v1057 = vtanh.pop %v1050
    %v1058 = vmul.f32 %v1056, %v984
    %1060 = vrot.lane.b32.xlu0 %v1057, 64
    %v1061 = vpop.permute.xlu0 %1060
    %v1063 = vmul.f32 %v1056, %v1061
    %1065 = vrot.lane.b32.xlu0 %v1063, 32
    %v1066 = vpop.permute.xlu0 %1065
    %v1068 = vadd.f32 %v1058, %v1066
    %v1069 = vtanh.pop %v1068
    %1071 = vrot.lane.b32.xlu0 %v1069, 64
    %v1072 = vpop.permute.xlu0 %1071
    %v1074 = vmul.f32 %v1056, %v1072
    %v1075 = vpack.c.bf16 %v1074, %v1074
    %1077 = vrot.lane.b32.xlu0 %v1075, 32
    %v1078 = vpop.permute.xlu0 %1077
    %v1080 = vsel %vm250, %v1078, 0
    %1082 = vmatprep.subr.bf16.mxu0 0
    %1083 = vmatpush1.bf16.msra.mxu0 %v1003
    %1084 = vmatprep.subr.bf16.mxu0 0
    %1085 = vmatpush1.bf16.msra.mxu0 %v1004
    %1086 = vmatprep.subr.bf16.mxu0 0
    %1087 = vmatpush1.bf16.msra.mxu0 0
    %1088 = vmatprep.subr.bf16.mxu0 0
    %1089 = vmatpush1.bf16.msra.mxu0 0
    %1090 = vmatprep.subr.bf16.mxu0 0
    %1091 = vmatpush1.bf16.msra.mxu0 0
    %1092 = vmatprep.subr.bf16.mxu0 0
    %1093 = vmatpush1.bf16.msra.mxu0 0
    %1094 = vmatprep.subr.bf16.mxu0 0
    %1095 = vmatpush1.bf16.msra.mxu0 0
    %1096 = vmatprep.subr.bf16.mxu0 0
    %1097 = vmatpush1.bf16.msra.mxu0 0
    %1098 = vmatprep.subr.bf16.mxu0 0
    %1099 = vmatpush1.bf16.msra.mxu0 0
    %1100 = vmatprep.subr.bf16.mxu0 0
    %1101 = vmatpush1.bf16.msra.mxu0 0
    %1102 = vmatprep.subr.bf16.mxu0 0
    %1103 = vmatpush1.bf16.msra.mxu0 0
    %1104 = vmatprep.subr.bf16.mxu0 0
    %1105 = vmatpush1.bf16.msra.mxu0 0
    %1106 = vmatprep.subr.bf16.mxu0 0
    %1107 = vmatpush1.bf16.msra.mxu0 0
    %1108 = vmatprep.subr.bf16.mxu0 0
    %1109 = vmatpush1.bf16.msra.mxu0 0
    %1110 = vmatprep.subr.bf16.mxu0 0
    %1111 = vmatpush1.bf16.msra.mxu0 0
    %1112 = vmatprep.subr.bf16.mxu0 0
    %1113 = vmatpush1.bf16.msra.mxu0 0
    %1114 = vmatprep.mubr.bf16.mxu0 0
    %1115 = vmatmul.mubr.bf16.gmra.mrb[0].mxu0 %v1080
    %v1116 = vpop.f32.mrb[0].mxu0
    %v1117 = vadd.f32 0.0, %v1116
    %v1118 = vpop.f32.mrb[0].mxu0
    %v1119 = vpop.f32.mrb[0].mxu0
    %v1120 = vpop.f32.mrb[0].mxu0
    %1121 = vdwg.mxu0
    %v1122 = vadd.f32 %v561, %v1117
    %v1123 = vxor.u32 %v1122, 2147483648
    %v1124 = vmul.f32 %v1123, 1.442695
    %v1125 = vpow.pop %v1124
    %v1126 = vadd.f32 %v1125, 1.0
    %v1127 = vrcp.pop %v1126
    %v1128 = vmul.f32 1.0, %v1127
    %v1129 = vtanh.pop %v1122
    %v1130 = vmul.f32 %v1128, %v1068
    %1132 = vrot.lane.b32.xlu0 %v1129, 64
    %v1133 = vpop.permute.xlu0 %1132
    %v1135 = vmul.f32 %v1128, %v1133
    %1137 = vrot.lane.b32.xlu0 %v1135, 32
    %v1138 = vpop.permute.xlu0 %1137
    %v1140 = vadd.f32 %v1130, %v1138
    %v1141 = vtanh.pop %v1140
    %1143 = vrot.lane.b32.xlu0 %v1141, 64
    %v1144 = vpop.permute.xlu0 %1143
    %v1146 = vmul.f32 %v1128, %v1144
    %v1147 = vpack.c.bf16 %v1146, %v1146
    %1149 = vrot.lane.b32.xlu0 %v1147, 32
    %v1150 = vpop.permute.xlu0 %1149
    %v1152 = vsel %vm250, %v1150, 0
    %1154 = vmatprep.subr.bf16.mxu0 0
    %1155 = vmatpush1.bf16.msra.mxu0 %v1003
    %1156 = vmatprep.subr.bf16.mxu0 0
    %1157 = vmatpush1.bf16.msra.mxu0 %v1004
    %1158 = vmatprep.subr.bf16.mxu0 0
    %1159 = vmatpush1.bf16.msra.mxu0 0
    %1160 = vmatprep.subr.bf16.mxu0 0
    %1161 = vmatpush1.bf16.msra.mxu0 0
    %1162 = vmatprep.subr.bf16.mxu0 0
    %1163 = vmatpush1.bf16.msra.mxu0 0
    %1164 = vmatprep.subr.bf16.mxu0 0
    %1165 = vmatpush1.bf16.msra.mxu0 0
    %1166 = vmatprep.subr.bf16.mxu0 0
    %1167 = vmatpush1.bf16.msra.mxu0 0
    %1168 = vmatprep.subr.bf16.mxu0 0
    %1169 = vmatpush1.bf16.msra.mxu0 0
    %1170 = vmatprep.subr.bf16.mxu0 0
    %1171 = vmatpush1.bf16.msra.mxu0 0
    %1172 = vmatprep.subr.bf16.mxu0 0
    %1173 = vmatpush1.bf16.msra.mxu0 0
    %1174 = vmatprep.subr.bf16.mxu0 0
    %1175 = vmatpush1.bf16.msra.mxu0 0
    %1176 = vmatprep.subr.bf16.mxu0 0
    %1177 = vmatpush1.bf16.msra.mxu0 0
    %1178 = vmatprep.subr.bf16.mxu0 0
    %1179 = vmatpush1.bf16.msra.mxu0 0
    %1180 = vmatprep.subr.bf16.mxu0 0
    %1181 = vmatpush1.bf16.msra.mxu0 0
    %1182 = vmatprep.subr.bf16.mxu0 0
    %1183 = vmatpush1.bf16.msra.mxu0 0
    %1184 = vmatprep.subr.bf16.mxu0 0
    %1185 = vmatpush1.bf16.msra.mxu0 0
    %1186 = vmatprep.mubr.bf16.mxu0 0
    %1187 = vmatmul.mubr.bf16.gmra.mrb[0].mxu0 %v1152
    %v1188 = vpop.f32.mrb[0].mxu0
    %v1189 = vadd.f32 0.0, %v1188
    %v1190 = vpop.f32.mrb[0].mxu0
    %v1191 = vpop.f32.mrb[0].mxu0
    %v1192 = vpop.f32.mrb[0].mxu0
    %1193 = vdwg.mxu0
    %v1194 = vadd.f32 %v642, %v1189
    %v1195 = vxor.u32 %v1194, 2147483648
    %v1196 = vmul.f32 %v1195, 1.442695
    %v1197 = vpow.pop %v1196
    %v1198 = vadd.f32 %v1197, 1.0
    %v1199 = vrcp.pop %v1198
    %v1200 = vmul.f32 1.0, %v1199
    %v1201 = vtanh.pop %v1194
    %v1202 = vmul.f32 %v1200, %v1140
    %1204 = vrot.lane.b32.xlu0 %v1201, 64
    %v1205 = vpop.permute.xlu0 %1204
    %v1207 = vmul.f32 %v1200, %v1205
    %1209 = vrot.lane.b32.xlu0 %v1207, 32
    %v1210 = vpop.permute.xlu0 %1209
    %v1212 = vadd.f32 %v1202, %v1210
    %v1213 = vtanh.pop %v1212
    %1215 = vrot.lane.b32.xlu0 %v1213, 64
    %v1216 = vpop.permute.xlu0 %1215
    %v1218 = vmul.f32 %v1200, %v1216
    %v1219 = vpack.c.bf16 %v1218, %v1218
    %1221 = vrot.lane.b32.xlu0 %v1219, 32
    %v1222 = vpop.permute.xlu0 %1221
    %v1224 = vsel %vm250, %v1222, 0
    %1226 = vmatprep.subr.bf16.mxu0 0
    %1227 = vmatpush1.bf16.msra.mxu0 %v1003
    %1228 = vmatprep.subr.bf16.mxu0 0
    %1229 = vmatpush1.bf16.msra.mxu0 %v1004
    %1230 = vmatprep.subr.bf16.mxu0 0
    %1231 = vmatpush1.bf16.msra.mxu0 0
    %1232 = vmatprep.subr.bf16.mxu0 0
    %1233 = vmatpush1.bf16.msra.mxu0 0
    %1234 = vmatprep.subr.bf16.mxu0 0
    %1235 = vmatpush1.bf16.msra.mxu0 0
    %1236 = vmatprep.subr.bf16.mxu0 0
    %1237 = vmatpush1.bf16.msra.mxu0 0
    %1238 = vmatprep.subr.bf16.mxu0 0
    %1239 = vmatpush1.bf16.msra.mxu0 0
    %1240 = vmatprep.subr.bf16.mxu0 0
    %1241 = vmatpush1.bf16.msra.mxu0 0
    %1242 = vmatprep.subr.bf16.mxu0 0
    %1243 = vmatpush1.bf16.msra.mxu0 0
    %1244 = vmatprep.subr.bf16.mxu0 0
    %1245 = vmatpush1.bf16.msra.mxu0 0
    %1246 = vmatprep.subr.bf16.mxu0 0
    %1247 = vmatpush1.bf16.msra.mxu0 0
    %1248 = vmatprep.subr.bf16.mxu0 0
    %1249 = vmatpush1.bf16.msra.mxu0 0
    %1250 = vmatprep.subr.bf16.mxu0 0
    %1251 = vmatpush1.bf16.msra.mxu0 0
    %1252 = vmatprep.subr.bf16.mxu0 0
    %1253 = vmatpush1.bf16.msra.mxu0 0
    %1254 = vmatprep.subr.bf16.mxu0 0
    %1255 = vmatpush1.bf16.msra.mxu0 0
    %1256 = vmatprep.subr.bf16.mxu0 0
    %1257 = vmatpush1.bf16.msra.mxu0 0
    %1258 = vmatprep.mubr.bf16.mxu0 0
    %1259 = vmatmul.mubr.bf16.gmra.mrb[0].mxu0 %v1224
    %v1260 = vpop.f32.mrb[0].mxu0
    %v1261 = vadd.f32 0.0, %v1260
    %v1262 = vpop.f32.mrb[0].mxu0
    %v1263 = vpop.f32.mrb[0].mxu0
    %v1264 = vpop.f32.mrb[0].mxu0
    %1265 = vdwg.mxu0
    %v1266 = vadd.f32 %v719, %v1261
    %v1267 = vxor.u32 %v1266, 2147483648
    %v1268 = vmul.f32 %v1267, 1.442695
    %v1269 = vpow.pop %v1268
    %v1270 = vadd.f32 %v1269, 1.0
    %v1271 = vrcp.pop %v1270
    %v1272 = vmul.f32 1.0, %v1271
    %v1273 = vtanh.pop %v1266
    %v1274 = vmul.f32 %v1272, %v1212
    %1276 = vrot.lane.b32.xlu0 %v1273, 64
    %v1277 = vpop.permute.xlu0 %1276
    %v1279 = vmul.f32 %v1272, %v1277
    %1281 = vrot.lane.b32.xlu0 %v1279, 32
    %v1282 = vpop.permute.xlu0 %1281
    %v1284 = vadd.f32 %v1274, %v1282
    %v1285 = vtanh.pop %v1284
    %1287 = vrot.lane.b32.xlu0 %v1285, 64
    %v1288 = vpop.permute.xlu0 %1287
    %v1290 = vmul.f32 %v1272, %v1288
    %v1291 = vpack.c.bf16 %v1290, %v1290
    %1293 = vrot.lane.b32.xlu0 %v1291, 32
    %v1294 = vpop.permute.xlu0 %1293
    %v1296 = vsel %vm250, %v1294, 0
    %1298 = vmatprep.subr.bf16.mxu0 0
    %1299 = vmatpush1.bf16.msra.mxu0 %v1003
    %1300 = vmatprep.subr.bf16.mxu0 0
    %1301 = vmatpush1.bf16.msra.mxu0 %v1004
    %1302 = vmatprep.subr.bf16.mxu0 0
    %1303 = vmatpush1.bf16.msra.mxu0 0
    %1304 = vmatprep.subr.bf16.mxu0 0
    %1305 = vmatpush1.bf16.msra.mxu0 0
    %1306 = vmatprep.subr.bf16.mxu0 0
    %1307 = vmatpush1.bf16.msra.mxu0 0
    %1308 = vmatprep.subr.bf16.mxu0 0
    %1309 = vmatpush1.bf16.msra.mxu0 0
    %1310 = vmatprep.subr.bf16.mxu0 0
    %1311 = vmatpush1.bf16.msra.mxu0 0
    %1312 = vmatprep.subr.bf16.mxu0 0
    %1313 = vmatpush1.bf16.msra.mxu0 0
    %1314 = vmatprep.subr.bf16.mxu0 0
    %1315 = vmatpush1.bf16.msra.mxu0 0
    %1316 = vmatprep.subr.bf16.mxu0 0
    %1317 = vmatpush1.bf16.msra.mxu0 0
    %1318 = vmatprep.subr.bf16.mxu0 0
    %1319 = vmatpush1.bf16.msra.mxu0 0
    %1320 = vmatprep.subr.bf16.mxu0 0
    %1321 = vmatpush1.bf16.msra.mxu0 0
    %1322 = vmatprep.subr.bf16.mxu0 0
    %1323 = vmatpush1.bf16.msra.mxu0 0
    %1324 = vmatprep.subr.bf16.mxu0 0
    %1325 = vmatpush1.bf16.msra.mxu0 0
    %1326 = vmatprep.subr.bf16.mxu0 0
    %1327 = vmatpush1.bf16.msra.mxu0 0
    %1328 = vmatprep.subr.bf16.mxu0 0
    %1329 = vmatpush1.bf16.msra.mxu0 0
    %1330 = vmatprep.mubr.bf16.mxu0 0
    %1331 = vmatmul.mubr.bf16.gmra.mrb[0].mxu0 %v1296
    %v1332 = vpop.f32.mrb[0].mxu0
    %v1333 = vadd.f32 0.0, %v1332
    %v1334 = vpop.f32.mrb[0].mxu0
    %v1335 = vpop.f32.mrb[0].mxu0
    %v1336 = vpop.f32.mrb[0].mxu0
    %1337 = vdwg.mxu0
    %v1338 = vadd.f32 %v800, %v1333
    %v1339 = vxor.u32 %v1338, 2147483648
    %v1340 = vmul.f32 %v1339, 1.442695
    %v1341 = vpow.pop %v1340
    %v1342 = vadd.f32 %v1341, 1.0
    %v1343 = vrcp.pop %v1342
    %v1344 = vmul.f32 1.0, %v1343
    %v1345 = vtanh.pop %v1338
    %v1346 = vmul.f32 %v1344, %v1284
    %1348 = vrot.lane.b32.xlu0 %v1345, 64
    %v1349 = vpop.permute.xlu0 %1348
    %v1351 = vmul.f32 %v1344, %v1349
    %1353 = vrot.lane.b32.xlu0 %v1351, 32
    %v1354 = vpop.permute.xlu0 %1353
    %v1356 = vadd.f32 %v1346, %v1354
    %v1357 = vtanh.pop %v1356
    %1359 = vrot.lane.b32.xlu0 %v1357, 64
    %v1360 = vpop.permute.xlu0 %1359
    %v1362 = vmul.f32 %v1344, %v1360
    %v1363 = vpack.c.bf16 %v1362, %v1362
    %1365 = vrot.lane.b32.xlu0 %v1363, 32
    %v1366 = vpop.permute.xlu0 %1365
    %v1368 = vsel %vm250, %v1366, 0
    %1370 = vmatprep.subr.bf16.mxu0 0
    %1371 = vmatpush1.bf16.msra.mxu0 %v1003
    %1372 = vmatprep.subr.bf16.mxu0 0
    %1373 = vmatpush1.bf16.msra.mxu0 %v1004
    %1374 = vmatprep.subr.bf16.mxu0 0
    %1375 = vmatpush1.bf16.msra.mxu0 0
    %1376 = vmatprep.subr.bf16.mxu0 0
    %1377 = vmatpush1.bf16.msra.mxu0 0
    %1378 = vmatprep.subr.bf16.mxu0 0
    %1379 = vmatpush1.bf16.msra.mxu0 0
    %1380 = vmatprep.subr.bf16.mxu0 0
    %1381 = vmatpush1.bf16.msra.mxu0 0
    %1382 = vmatprep.subr.bf16.mxu0 0
    %1383 = vmatpush1.bf16.msra.mxu0 0
    %1384 = vmatprep.subr.bf16.mxu0 0
    %1385 = vmatpush1.bf16.msra.mxu0 0
    %1386 = vmatprep.subr.bf16.mxu0 0
    %1387 = vmatpush1.bf16.msra.mxu0 0
    %1388 = vmatprep.subr.bf16.mxu0 0
    %1389 = vmatpush1.bf16.msra.mxu0 0
    %1390 = vmatprep.subr.bf16.mxu0 0
    %1391 = vmatpush1.bf16.msra.mxu0 0
    %1392 = vmatprep.subr.bf16.mxu0 0
    %1393 = vmatpush1.bf16.msra.mxu0 0
    %1394 = vmatprep.subr.bf16.mxu0 0
    %1395 = vmatpush1.bf16.msra.mxu0 0
    %1396 = vmatprep.subr.bf16.mxu0 0
    %1397 = vmatpush1.bf16.msra.mxu0 0
    %1398 = vmatprep.subr.bf16.mxu0 0
    %1399 = vmatpush1.bf16.msra.mxu0 0
    %1400 = vmatprep.subr.bf16.mxu0 0
    %1401 = vmatpush1.bf16.msra.mxu0 0
    %1402 = vmatprep.mubr.bf16.mxu0 0
    %1403 = vmatmul.mubr.bf16.gmra.mrb[0].mxu0 %v1368
    %v1404 = vpop.f32.mrb[0].mxu0
    %v1405 = vadd.f32 0.0, %v1404
    %v1406 = vpop.f32.mrb[0].mxu0
    %v1407 = vpop.f32.mrb[0].mxu0
    %v1408 = vpop.f32.mrb[0].mxu0
    %1409 = vdwg.mxu0
    %v1410 = vadd.f32 %v881, %v1405
    %v1411 = vxor.u32 %v1410, 2147483648
    %v1412 = vmul.f32 %v1411, 1.442695
    %v1413 = vpow.pop %v1412
    %v1414 = vadd.f32 %v1413, 1.0
    %v1415 = vrcp.pop %v1414
    %v1416 = vmul.f32 1.0, %v1415
    %v1417 = vtanh.pop %v1410
    %v1418 = vmul.f32 %v1416, %v1356
    %1420 = vrot.lane.b32.xlu0 %v1417, 64
    %v1421 = vpop.permute.xlu0 %1420
    %v1423 = vmul.f32 %v1416, %v1421
    %1425 = vrot.lane.b32.xlu0 %v1423, 32
    %v1426 = vpop.permute.xlu0 %1425
    %v1428 = vadd.f32 %v1418, %v1426
    %v1429 = vtanh.pop %v1428
    %1431 = vrot.lane.b32.xlu0 %v1429, 64
    %v1432 = vpop.permute.xlu0 %1431
    %v1434 = vmul.f32 %v1416, %v1432
    %v1435 = vpack.c.bf16 %v1434, %v1434
    %1437 = vrot.lane.b32.xlu0 %v1435, 32
    %v1438 = vpop.permute.xlu0 %1437
    %v1440 = vsel %vm250, %v1438, 0
    %1442 = vmatprep.subr.bf16.mxu0 0
    %1443 = vmatpush1.bf16.msra.mxu0 %v1003
    %1444 = vmatprep.subr.bf16.mxu0 0
    %1445 = vmatpush1.bf16.msra.mxu0 %v1004
    %1446 = vmatprep.subr.bf16.mxu0 0
    %1447 = vmatpush1.bf16.msra.mxu0 0
    %1448 = vmatprep.subr.bf16.mxu0 0
    %1449 = vmatpush1.bf16.msra.mxu0 0
    %1450 = vmatprep.subr.bf16.mxu0 0
    %1451 = vmatpush1.bf16.msra.mxu0 0
    %1452 = vmatprep.subr.bf16.mxu0 0
    %1453 = vmatpush1.bf16.msra.mxu0 0
    %1454 = vmatprep.subr.bf16.mxu0 0
    %1455 = vmatpush1.bf16.msra.mxu0 0
    %1456 = vmatprep.subr.bf16.mxu0 0
    %1457 = vmatpush1.bf16.msra.mxu0 0
    %1458 = vmatprep.subr.bf16.mxu0 0
    %1459 = vmatpush1.bf16.msra.mxu0 0
    %1460 = vmatprep.subr.bf16.mxu0 0
    %1461 = vmatpush1.bf16.msra.mxu0 0
    %1462 = vmatprep.subr.bf16.mxu0 0
    %1463 = vmatpush1.bf16.msra.mxu0 0
    %1464 = vmatprep.subr.bf16.mxu0 0
    %1465 = vmatpush1.bf16.msra.mxu0 0
    %1466 = vmatprep.subr.bf16.mxu0 0
    %1467 = vmatpush1.bf16.msra.mxu0 0
    %1468 = vmatprep.subr.bf16.mxu0 0
    %1469 = vmatpush1.bf16.msra.mxu0 0
    %1470 = vmatprep.subr.bf16.mxu0 0
    %1471 = vmatpush1.bf16.msra.mxu0 0
    %1472 = vmatprep.subr.bf16.mxu0 0
    %1473 = vmatpush1.bf16.msra.mxu0 0
    %1474 = vmatprep.mubr.bf16.mxu0 0
    %1475 = vmatmul.mubr.bf16.gmra.mrb[0].mxu0 %v1440
    %v1476 = vpop.f32.mrb[0].mxu0
    %v1477 = vadd.f32 0.0, %v1476
    %v1478 = vpop.f32.mrb[0].mxu0
    %v1479 = vpop.f32.mrb[0].mxu0
    %v1480 = vpop.f32.mrb[0].mxu0
    %1481 = vdwg.mxu0
    %v1482 = vadd.f32 %v961, %v1477
    %v1483 = vxor.u32 %v1482, 2147483648
    %v1484 = vmul.f32 %v1483, 1.442695
    %v1485 = vpow.pop %v1484
    %v1486 = vadd.f32 %v1485, 1.0
    %v1487 = vrcp.pop %v1486
    %v1488 = vmul.f32 1.0, %v1487
    %v1489 = vtanh.pop %v1482
    %v1490 = vmul.f32 %v1488, %v1428
    %1492 = vrot.lane.b32.xlu0 %v1489, 64
    %v1493 = vpop.permute.xlu0 %1492
    %v1495 = vmul.f32 %v1488, %v1493
    %1497 = vrot.lane.b32.xlu0 %v1495, 32
    %v1498 = vpop.permute.xlu0 %1497
    %v1500 = vadd.f32 %v1490, %v1498
    %v1501 = vtanh.pop %v1500
    %1503 = vrot.lane.b32.xlu0 %v1501, 64
    %v1504 = vpop.permute.xlu0 %1503
    %v1506 = vmul.f32 %v1488, %v1504
    %1508 = vrot.lane.b32.xlu0 %v912, 32
    %v1509 = vpop.permute.xlu0 %1508
    %v1512 = vrot.slane %v1506, 2
    %1513 = vrot.lane.b32.xlu0 %v1512, 96
    %v1514 = vpop.permute.xlu0 %1513
    %v1517 = vrot.slane %v1500, 2
    %1518 = vrot.lane.b32.xlu0 %v1517, 64
    %v1519 = vpop.permute.xlu0 %1518
    %v1521 = vsel %vm250, %v1509, %v906
    %vm1522 = vcmask 523264
    %v1523 = vsel %vm1522, %v1521, %v1514
    %vm1524 = vcmask 785408
    %v1525 = vsel %vm1524, %v1523, %v1519
    %v1526 = vtanh.pop %v1525
    %v1527 = vpack.c.bf16 %v1526, %v1526
    %v1528 = vld [vmem:[%s7] sm:$0xf]
    %v1529 = vld [vmem:[%s7 + $0x4] sm:$0xf]
    %v1530 = vld [vmem:[%s7 + $0x8] sm:$0xf]
    %v1531 = vld [vmem:[%s7 + $0xc] sm:$0xf]
    %v1532 = vld [vmem:[%s7 + $0x10] sm:$0xf]
    %v1533 = vld [vmem:[%s7 + $0x14] sm:$0xf]
    %v1534 = vld [vmem:[%s7 + $0x18] sm:$0xf]
    %v1535 = vld [vmem:[%s7 + $0x1c] sm:$0xf]
    %v1536 = vld [vmem:[%s7 + $0x20] sm:$0xf]
    %v1537 = vld [vmem:[%s7 + $0x24] sm:$0xf]
    %v1538 = vld [vmem:[%s7 + $0x28] sm:$0xf]
    %v1539 = vld [vmem:[%s7 + $0x2c] sm:$0xf]
    %v1540 = vld [vmem:[%s7 + $0x30] sm:$0xf]
    %v1541 = vld [vmem:[%s7 + $0x34] sm:$0xf]
    %v1542 = vld [vmem:[%s7 + $0x38] sm:$0xf]
    %v1543 = vld [vmem:[%s7 + $0x3c] sm:$0xf]
    %v1544 = vld [vmem:[#allocation7] sm:$0x1]
    %v1546 = vlaneseq
    %v1547 = vshrl.u32 %v1546, 7
    %v1548 = vsub.s32 0, %v1547
    %v1549 = vrot.slane %v1544, %v1548
    %v1552 = vrot.slane %v1527, 3
    %v1570 = vunpack.c.l.b16 %v1528
    %v1571 = vunpack.c.l.b16 %v1529
    %v1572 = vunpack.c.l.b16 %v1530
    %v1573 = vunpack.c.l.b16 %v1531
    %v1574 = vunpack.c.l.b16 %v1532
    %v1575 = vunpack.c.l.b16 %v1533
    %v1576 = vunpack.c.l.b16 %v1534
    %v1577 = vunpack.c.l.b16 %v1535
    %v1578 = vunpack.c.l.b16 %v1536
    %v1579 = vunpack.c.l.b16 %v1537
    %v1580 = vunpack.c.l.b16 %v1538
    %v1581 = vunpack.c.l.b16 %v1539
    %v1582 = vunpack.c.l.b16 %v1540
    %v1583 = vunpack.c.l.b16 %v1541
    %v1584 = vunpack.c.l.b16 %v1542
    %v1585 = vunpack.c.l.b16 %v1543
    %v1586 = vpack.c.b16 %v1571, %v1570
    %v1587 = vpack.c.b16 %v1573, %v1572
    %v1588 = vpack.c.b16 %v1575, %v1574
    %v1589 = vpack.c.b16 %v1577, %v1576
    %v1590 = vpack.c.b16 %v1579, %v1578
    %v1591 = vpack.c.b16 %v1581, %v1580
    %v1592 = vpack.c.b16 %v1583, %v1582
    %v1593 = vpack.c.b16 %v1585, %v1584
    %1602 = vmatprep.subr.bf16.mxu0 0
    %1603 = vmatpush1.bf16.msra.mxu0 %v1586
    %1604 = vmatprep.subr.bf16.mxu0 0
    %1605 = vmatpush1.bf16.msra.mxu0 %v1587
    %1606 = vmatprep.subr.bf16.mxu0 0
    %1607 = vmatpush1.bf16.msra.mxu0 %v1588
    %1608 = vmatprep.subr.bf16.mxu0 0
    %1609 = vmatpush1.bf16.msra.mxu0 %v1589
    %1610 = vmatprep.subr.bf16.mxu0 0
    %1611 = vmatpush1.bf16.msra.mxu0 %v1590
    %1612 = vmatprep.subr.bf16.mxu0 0
    %1613 = vmatpush1.bf16.msra.mxu0 %v1591
    %1614 = vmatprep.subr.bf16.mxu0 0
    %1615 = vmatpush1.bf16.msra.mxu0 %v1592
    %1616 = vmatprep.subr.bf16.mxu0 0
    %1617 = vmatpush1.bf16.msra.mxu0 %v1593
    %1618 = vmatprep.subr.bf16.mxu0 0
    %1619 = vmatpush1.bf16.msra.mxu0 0
    %1620 = vmatprep.subr.bf16.mxu0 0
    %1621 = vmatpush1.bf16.msra.mxu0 0
    %1622 = vmatprep.subr.bf16.mxu0 0
    %1623 = vmatpush1.bf16.msra.mxu0 0
    %1624 = vmatprep.subr.bf16.mxu0 0
    %1625 = vmatpush1.bf16.msra.mxu0 0
    %1626 = vmatprep.subr.bf16.mxu0 0
    %1627 = vmatpush1.bf16.msra.mxu0 0
    %1628 = vmatprep.subr.bf16.mxu0 0
    %1629 = vmatpush1.bf16.msra.mxu0 0
    %1630 = vmatprep.subr.bf16.mxu0 0
    %1631 = vmatpush1.bf16.msra.mxu0 0
    %1632 = vmatprep.subr.bf16.mxu0 0
    %1633 = vmatpush1.bf16.msra.mxu0 0
    %1634 = vmatprep.mubr.bf16.mxu0 0
    %1635 = vmatmul.mubr.bf16.gmra.mrb[0].mxu0 %v1552
    %v1636 = vpop.f32.mrb[0].mxu0
    %v1637 = vadd.f32 %v1549, %v1636
    %v1638 = vpop.f32.mrb[0].mxu0
    %v1639 = vpop.f32.mrb[0].mxu0
    %v1640 = vpop.f32.mrb[0].mxu0
    %1641 = vdwg.mxu0
    %vm1642 = vcmask 254976
    %1643 = vst.msk [vmem:[#allocation9] sm:$0x3] %vm1642, %v1637
    // Predicated region
    $region50: #{qst_lstm_encoder_forward.1} parent=1 // pred_check
      _
    $region51: #{qst_lstm_encoder_forward.1} parent=1 // pred_check_branch
      %1645 = sbr.rel (0) target = $region53
    $region52: #{qst_lstm_encoder_forward.1} parent=1 // pred_region
      %s1647 = ssub.s32 32, 32
      %1648 = vsyncadd [#allocation4], %s1647
      %s1650 = sshll.u32 [#allocation9], 4
      %s1651 = int_to_ptr.vmem [resolvable:$true] %s1650
      %1653 = dma.vmem_to_hbm [thread:$0]  %s1651, 32, %s9, [#allocation4]
    $region53: #{qst_lstm_encoder_forward.1} parent=1 // pred_fallthru
      _
    // Predicated region
    $region54: #{qst_lstm_encoder_forward.1} parent=1 // pred_check
      _
    $region55: #{qst_lstm_encoder_forward.1} parent=1 // pred_check_branch
      %1655 = sbr.rel (0) target = $region57
    $region56: #{qst_lstm_encoder_forward.1} parent=1 // pred_region
      %1656 = dma.done [#allocation4], 32
    $region57: #{qst_lstm_encoder_forward.1} parent=1 // pred_fallthru
      _
    %1657 = vsyncpa [#allocation3], 1
    %1658 = vsyncpa [#allocation8], 1
    %1659 = vsyncpa [#allocation4], 1
    %1660 = vsyncpa [#allocation5], 1

</llo_original>
